<compile_context>
chip_gen: v7x
topology: tpu7x:2x2x1
jax: 0.10.0
libtpu: 0.0.40
codegen_flags: <defaults>
</compile_context>

<pallas_src>
import jax
import jax.numpy as jnp
from jax import lax
from jax.experimental import pallas as pl
from jax.experimental.pallas import tpu as pltpu


# --------------------------- in-kernel helpers -------------------------------
def _conv1d_same_cf(x, w_flat, b, *, relu):
    """k=3 'same' Conv1d, channel-first, as a single MXU matmul (im2col).

    x:      (Cin, L)       f32 activation (VMEM/vregs)
    w_flat: (Cout, 3*Cin)  packed so w_flat[co, k*Cin + ci] == W_torch[co, ci, k]
    b:      (Cout, 1)
    returns (Cout, L)
    """
    cin, length = x.shape
    zero = jnp.zeros((cin, 1), dtype=x.dtype)
    left = jnp.concatenate([zero, x[:, : length - 1]], axis=1)   # tap k=0: x[l-1]
    right = jnp.concatenate([x[:, 1:], zero], axis=1)            # tap k=2: x[l+1]
    cols = jnp.concatenate([left, x, right], axis=0)             # (3*Cin, L)
    y = jnp.dot(w_flat, cols, preferred_element_type=jnp.float32) + b
    if relu:
        y = jnp.maximum(y, 0.0)
    return y


# --------------------------------- kernel ------------------------------------
def _decoder_kernel(x_ref, w1_ref, b1_ref, w2_ref, b2_ref, w3_ref, b3_ref,
                    u4_ref, u8_ref, w4s_ref, w40_ref, w42_ref, b4_ref, o_ref):
    x = x_ref[0].astype(jnp.float32)                                    # (4, L0)

    # conv1 + relu -> upsample x4 (precomputed one-hot) -> conv2 + relu
    y = _conv1d_same_cf(x, w1_ref[...], b1_ref[...], relu=True)         # (64, L0)
    y = jnp.dot(y, u4_ref[...], preferred_element_type=jnp.float32)     # (64, 4L0)
    y = _conv1d_same_cf(y, w2_ref[...], b2_ref[...], relu=True)         # (64, 4L0)
    # upsample x8 (precomputed one-hot) -> conv3 + relu
    y = jnp.dot(y, u8_ref[...], preferred_element_type=jnp.float32)     # (64, 32L0)
    y = _conv1d_same_cf(y, w3_ref[...], b3_ref[...], relu=True)         # (64, L3)

    # ---- polyphase (sub-pixel) fusion of upsample x8 + conv4 ---------------
    # out[:, 8q+p] = mid[:, q]                         for p = 1..6
    # out[:, 8q+0] = mid[:, q] + W0 @ (y[q-1] - y[q])  (y[-1]  := 0)
    # out[:, 8q+7] = mid[:, q] + W2 @ (y[q+1] - y[q])  (y[L3]  := 0)
    # with mid = (W0+W1+W2) @ y + b4   (matches 'same'-padding boundaries).
    c3, l3 = y.shape
    zero = jnp.zeros((c3, 1), dtype=y.dtype)
    yl = jnp.concatenate([zero, y[:, : l3 - 1]], axis=1)                 # y[q-1]
    yr = jnp.concatenate([y[:, 1:], zero], axis=1)                       # y[q+1]

    mid = jnp.dot(w4s_ref[...], y, preferred_element_type=jnp.float32) + b4_ref[...]
    p0 = mid + jnp.dot(w40_ref[...], yl - y, preferred_element_type=jnp.float32)
    p7 = mid + jnp.dot(w42_ref[...], yr - y, preferred_element_type=jnp.float32)

    # Phase-major, lane-dense stores: each is a full contiguous (20, L3) slab.
    mid = mid.astype(o_ref.dtype)
    o_ref[0, 0] = p0.astype(o_ref.dtype)
    for p in range(1, 7):
        o_ref[0, p] = mid
    o_ref[0, 7] = p7.astype(o_ref.dtype)


# --------------------------------- wrapper -----------------------------------
def _pack_conv(w_oik, b):
    """PyTorch Conv1d weight (Cout, Cin, 3) -> (Cout, 3*Cin) im2col layout."""
    cout = w_oik.shape[0]
    w_flat = jnp.transpose(w_oik, (0, 2, 1)).reshape(cout, -1)
    return w_flat, b.reshape(cout, 1)


def _upsample_matrix(length, r, dtype=jnp.float32):
    """Exact one-hot nearest-upsample matrix U[i, j] = (i == j // r)."""
    rows = jnp.arange(length)[:, None]
    cols = jnp.arange(r * length)[None, :]
    return (rows == cols // r).astype(dtype)


@jax.jit
def decoder_forward(params, x_ncl):
    """Fused Pallas Decoder forward.  x_ncl: (N, 4, L0) PyTorch NCL layout."""
    n, cin, l0 = x_ncl.shape
    l3 = l0 * 4 * 8           # length after upsample2 (input length of conv4 stage)
    lout = l3 * 8
    cout = 20

    w1, b1 = _pack_conv(*params["deconv1"])   # (64, 12),  (64, 1)
    w2, b2 = _pack_conv(*params["deconv2"])   # (64, 192), (64, 1)
    w3, b3 = _pack_conv(*params["deconv3"])   # (64, 192), (64, 1)
    w4, b4v = params["deconv4"]               # (20, 64, 3), (20,)
    w4_0 = w4[:, :, 0]
    w4_2 = w4[:, :, 2]
    w4_sum = w4[:, :, 0] + w4[:, :, 1] + w4[:, :, 2]
    b4 = b4v.reshape(cout, 1)

    u4 = _upsample_matrix(l0, 4)              # (L0,  4L0)  — constant-folded by XLA
    u8 = _upsample_matrix(4 * l0, 8)          # (4L0, 32L0)

    def const(arr):
        shape = arr.shape
        return pl.BlockSpec(shape, lambda i, _s=shape: (0,) * len(_s))

    out_pm = pl.pallas_call(
        _decoder_kernel,
        out_shape=jax.ShapeDtypeStruct((n, 8, cout, l3), x_ncl.dtype),
        grid_spec=pltpu.PrefetchScalarGridSpec(
            num_scalar_prefetch=0,
            grid=(n,),
            in_specs=[
                pl.BlockSpec((1, cin, l0), lambda i: (i, 0, 0)),
                const(w1), const(b1),
                const(w2), const(b2),
                const(w3), const(b3),
                const(u4), const(u8),
                const(w4_sum), const(w4_0), const(w4_2), const(b4),
            ],
            out_specs=pl.BlockSpec((1, 8, cout, l3), lambda i: (i, 0, 0, 0)),
        ),
        compiler_params=pltpu.CompilerParams(
            dimension_semantics=("parallel",),
        ),
    )(x_ncl, w1, b1, w2, b2, w3, b3, u4, u8, w4_sum, w4_0, w4_2, b4)

    # phase-major (N, 8, 20, L3) -> PyTorch layout (N, 20, 8*L3).
    # Tiny layout-only copy (~160 KB/batch) done once in the wrapper.
    return out_pm.transpose(0, 2, 3, 1).reshape(n, cout, lout)


# ---------------------------- parameter init ---------------------------------
def init_decoder_params(key):
    """Deterministic init matching PyTorch Conv1d parameter shapes."""
    def conv_init(k, cout, cin, ksz=3):
        kw, kb = jax.random.split(k)
        fan_in = cin * ksz
        bound = 1.0 / jnp.sqrt(jnp.asarray(fan_in, jnp.float32))
        w = jax.random.uniform(kw, (cout, cin, ksz), jnp.float32, -bound, bound)
        b = jax.random.uniform(kb, (cout,), jnp.float32, -bound, bound)
        return w, b

    keys = jax.random.split(key, 4)
    return {
        "deconv1": conv_init(keys[0], 64, 4),
        "deconv2": conv_init(keys[1], 64, 64),
        "deconv3": conv_init(keys[2], 64, 64),
        "deconv4": conv_init(keys[3], 20, 64),
    }


# ---------------- pure-JAX reference (for correctness check) -----------------
def _ref_conv1d_same(x_ncl, w_oik, b, apply_relu):
    out = lax.conv_general_dilated(
        x_ncl, w_oik, window_strides=(1,), padding="SAME",
        dimension_numbers=("NCH", "OIH", "NCH"))
    out = out + b[None, :, None]
    if apply_relu:
        out = jnp.maximum(out, 0.0)
    return out


def decoder_forward_ref(params, x_ncl):
    x = _ref_conv1d_same(x_ncl, *params["deconv1"], True)
    x = jnp.repeat(x, 4, axis=2)
    x = _ref_conv1d_same(x, *params["deconv2"], True)
    x = jnp.repeat(x, 8, axis=2)
    x = _ref_conv1d_same(x, *params["deconv3"], True)
    x = jnp.repeat(x, 8, axis=2)
    x = _ref_conv1d_same(x, *params["deconv4"], False)
    return x


if __name__ == "__main__":
    key = jax.random.PRNGKey(0)
    k_params, k_x = jax.random.split(key)

    params = init_decoder_params(k_params)
    x = jax.random.normal(k_x, (2, 4, 8), dtype=jnp.float32)   # (N, C=4, L0=8)

    out = jax.block_until_ready(decoder_forward(params, x))
    assert out.shape == (2, 20, 8 * 4 * 8 * 8), out.shape

    ref = jax.block_until_ready(decoder_forward_ref(params, x))
    max_err = float(jnp.max(jnp.abs(out - ref)))
    assert jnp.allclose(out, ref, atol=2e-3, rtol=2e-3), max_err

    print("KERNEL_OK")
</pallas_src>

<mosaic_0001>
module attributes {stable_mosaic.version = 11 : i64} {
  func.func @_decoder_kernel(%arg0: i32, %arg1: memref<1x4x8xf32, #tpu.memory_space<vmem>>, %arg2: memref<64x12xf32, #tpu.memory_space<vmem>>, %arg3: memref<64x1xf32, #tpu.memory_space<vmem>>, %arg4: memref<64x192xf32, #tpu.memory_space<vmem>>, %arg5: memref<64x1xf32, #tpu.memory_space<vmem>>, %arg6: memref<64x192xf32, #tpu.memory_space<vmem>>, %arg7: memref<64x1xf32, #tpu.memory_space<vmem>>, %arg8: memref<8x32xf32, #tpu.memory_space<vmem>>, %arg9: memref<32x256xf32, #tpu.memory_space<vmem>>, %arg10: memref<20x64xf32, #tpu.memory_space<vmem>>, %arg11: memref<20x64xf32, #tpu.memory_space<vmem>>, %arg12: memref<20x64xf32, #tpu.memory_space<vmem>>, %arg13: memref<20x1xf32, #tpu.memory_space<vmem>>, %arg14: memref<1x8x20x256xf32, #tpu.memory_space<vmem>>) attributes {dimension_semantics = [#tpu.dimension_semantics<parallel>], iteration_bounds = array<i64: 2>, scalar_prefetch = 0 : i64, scratch_operands = 0 : i64, tpu.core_type = #tpu.core_type<tc>, window_params = [{transform_indices = @transform_0, window_bounds = array<i64: 1, 4, 8>}, {pipeline_mode = #tpu.pipeline_mode<synchronous>, transform_indices = @transform_1, window_bounds = array<i64: 64, 12>}, {pipeline_mode = #tpu.pipeline_mode<synchronous>, transform_indices = @transform_2, window_bounds = array<i64: 64, 1>}, {pipeline_mode = #tpu.pipeline_mode<synchronous>, transform_indices = @transform_3, window_bounds = array<i64: 64, 192>}, {pipeline_mode = #tpu.pipeline_mode<synchronous>, transform_indices = @transform_4, window_bounds = array<i64: 64, 1>}, {pipeline_mode = #tpu.pipeline_mode<synchronous>, transform_indices = @transform_5, window_bounds = array<i64: 64, 192>}, {pipeline_mode = #tpu.pipeline_mode<synchronous>, transform_indices = @transform_6, window_bounds = array<i64: 64, 1>}, {pipeline_mode = #tpu.pipeline_mode<synchronous>, transform_indices = @transform_7, window_bounds = array<i64: 8, 32>}, {pipeline_mode = #tpu.pipeline_mode<synchronous>, transform_indices = @transform_8, window_bounds = array<i64: 32, 256>}, {pipeline_mode = #tpu.pipeline_mode<synchronous>, transform_indices = @transform_9, window_bounds = array<i64: 20, 64>}, {pipeline_mode = #tpu.pipeline_mode<synchronous>, transform_indices = @transform_10, window_bounds = array<i64: 20, 64>}, {pipeline_mode = #tpu.pipeline_mode<synchronous>, transform_indices = @transform_11, window_bounds = array<i64: 20, 64>}, {pipeline_mode = #tpu.pipeline_mode<synchronous>, transform_indices = @transform_12, window_bounds = array<i64: 20, 1>}, {transform_indices = @transform_13, window_bounds = array<i64: 1, 8, 20, 256>}]} {
    %c0 = arith.constant 0 : index
    %c0_0 = arith.constant 0 : index
    %c0_1 = arith.constant 0 : index
    %0 = vector.load %arg1[%c0, %c0_0, %c0_1] : memref<1x4x8xf32, #tpu.memory_space<vmem>>, vector<1x4x8xf32>
    %1 = vector.shape_cast %0 : vector<1x4x8xf32> to vector<4x8xf32>
    %c0_2 = arith.constant 0 : index
    %c0_3 = arith.constant 0 : index
    %2 = vector.load %arg2[%c0_2, %c0_3] : memref<64x12xf32, #tpu.memory_space<vmem>>, vector<64x12xf32>
    %c0_4 = arith.constant 0 : index
    %c0_5 = arith.constant 0 : index
    %3 = vector.load %arg3[%c0_4, %c0_5] : memref<64x1xf32, #tpu.memory_space<vmem>>, vector<64x1xf32>
    %cst = arith.constant 0.000000e+00 : f32
    %4 = vector.broadcast %cst : f32 to vector<4x1xf32>
    %5 = vector.extract_strided_slice %1 {offsets = [0, 0], sizes = [4, 7], strides = [1, 1]} : vector<4x8xf32> to vector<4x7xf32>
    %6 = tpu.concatenate %4, %5 in 1 : vector<4x1xf32>, vector<4x7xf32> -> vector<4x8xf32>
    %7 = vector.extract_strided_slice %1 {offsets = [0, 1], sizes = [4, 7], strides = [1, 1]} : vector<4x8xf32> to vector<4x7xf32>
    %8 = tpu.concatenate %7, %4 in 1 : vector<4x7xf32>, vector<4x1xf32> -> vector<4x8xf32>
    %9 = tpu.concatenate %6, %1, %8 in 0 : vector<4x8xf32>, vector<4x8xf32>, vector<4x8xf32> -> vector<12x8xf32>
    %cst_6 = arith.constant dense<0.000000e+00> : vector<64x8xf32>
    %10 = tpu.matmul %2, %9, %cst_6 {dimension_numbers = #tpu.dot_dimension_numbers<[1], [0], [0], [1], [0, 0, 1, 1], [], []>} : vector<64x12xf32>, vector<12x8xf32>, vector<64x8xf32> -> vector<64x8xf32>
    %11 = vector.broadcast %3 : vector<64x1xf32> to vector<64x8xf32>
    %12 = arith.addf %10, %11 : vector<64x8xf32>
    %cst_7 = arith.constant 0.000000e+00 : f32
    %13 = vector.broadcast %cst_7 : f32 to vector<64x8xf32>
    %14 = arith.maximumf %12, %13 : vector<64x8xf32>
    %c0_8 = arith.constant 0 : index
    %c0_9 = arith.constant 0 : index
    %15 = vector.load %arg8[%c0_8, %c0_9] : memref<8x32xf32, #tpu.memory_space<vmem>>, vector<8x32xf32>
    %cst_10 = arith.constant dense<0.000000e+00> : vector<64x32xf32>
    %16 = tpu.matmul %14, %15, %cst_10 {dimension_numbers = #tpu.dot_dimension_numbers<[1], [0], [0], [1], [0, 0, 1, 1], [], []>} : vector<64x8xf32>, vector<8x32xf32>, vector<64x32xf32> -> vector<64x32xf32>
    %c0_11 = arith.constant 0 : index
    %c0_12 = arith.constant 0 : index
    %17 = vector.load %arg4[%c0_11, %c0_12] : memref<64x192xf32, #tpu.memory_space<vmem>>, vector<64x192xf32>
    %c0_13 = arith.constant 0 : index
    %c0_14 = arith.constant 0 : index
    %18 = vector.load %arg5[%c0_13, %c0_14] : memref<64x1xf32, #tpu.memory_space<vmem>>, vector<64x1xf32>
    %cst_15 = arith.constant 0.000000e+00 : f32
    %19 = vector.broadcast %cst_15 : f32 to vector<64x1xf32>
    %20 = vector.extract_strided_slice %16 {offsets = [0, 0], sizes = [64, 31], strides = [1, 1]} : vector<64x32xf32> to vector<64x31xf32>
    %21 = tpu.concatenate %19, %20 in 1 : vector<64x1xf32>, vector<64x31xf32> -> vector<64x32xf32>
    %22 = vector.extract_strided_slice %16 {offsets = [0, 1], sizes = [64, 31], strides = [1, 1]} : vector<64x32xf32> to vector<64x31xf32>
    %23 = tpu.concatenate %22, %19 in 1 : vector<64x31xf32>, vector<64x1xf32> -> vector<64x32xf32>
    %24 = tpu.concatenate %21, %16, %23 in 0 : vector<64x32xf32>, vector<64x32xf32>, vector<64x32xf32> -> vector<192x32xf32>
    %cst_16 = arith.constant dense<0.000000e+00> : vector<64x32xf32>
    %25 = tpu.matmul %17, %24, %cst_16 {dimension_numbers = #tpu.dot_dimension_numbers<[1], [0], [0], [1], [0, 0, 1, 1], [], []>} : vector<64x192xf32>, vector<192x32xf32>, vector<64x32xf32> -> vector<64x32xf32>
    %26 = vector.broadcast %18 : vector<64x1xf32> to vector<64x32xf32>
    %27 = arith.addf %25, %26 : vector<64x32xf32>
    %cst_17 = arith.constant 0.000000e+00 : f32
    %28 = vector.broadcast %cst_17 : f32 to vector<64x32xf32>
    %29 = arith.maximumf %27, %28 : vector<64x32xf32>
    %c0_18 = arith.constant 0 : index
    %c0_19 = arith.constant 0 : index
    %30 = vector.load %arg9[%c0_18, %c0_19] : memref<32x256xf32, #tpu.memory_space<vmem>>, vector<32x256xf32>
    %cst_20 = arith.constant dense<0.000000e+00> : vector<64x256xf32>
    %31 = tpu.matmul %29, %30, %cst_20 {dimension_numbers = #tpu.dot_dimension_numbers<[1], [0], [0], [1], [0, 0, 1, 1], [], []>} : vector<64x32xf32>, vector<32x256xf32>, vector<64x256xf32> -> vector<64x256xf32>
    %c0_21 = arith.constant 0 : index
    %c0_22 = arith.constant 0 : index
    %32 = vector.load %arg6[%c0_21, %c0_22] : memref<64x192xf32, #tpu.memory_space<vmem>>, vector<64x192xf32>
    %c0_23 = arith.constant 0 : index
    %c0_24 = arith.constant 0 : index
    %33 = vector.load %arg7[%c0_23, %c0_24] : memref<64x1xf32, #tpu.memory_space<vmem>>, vector<64x1xf32>
    %cst_25 = arith.constant 0.000000e+00 : f32
    %34 = vector.broadcast %cst_25 : f32 to vector<64x1xf32>
    %35 = vector.extract_strided_slice %31 {offsets = [0, 0], sizes = [64, 255], strides = [1, 1]} : vector<64x256xf32> to vector<64x255xf32>
    %36 = tpu.concatenate %34, %35 in 1 : vector<64x1xf32>, vector<64x255xf32> -> vector<64x256xf32>
    %37 = vector.extract_strided_slice %31 {offsets = [0, 1], sizes = [64, 255], strides = [1, 1]} : vector<64x256xf32> to vector<64x255xf32>
    %38 = tpu.concatenate %37, %34 in 1 : vector<64x255xf32>, vector<64x1xf32> -> vector<64x256xf32>
    %39 = tpu.concatenate %36, %31, %38 in 0 : vector<64x256xf32>, vector<64x256xf32>, vector<64x256xf32> -> vector<192x256xf32>
    %cst_26 = arith.constant dense<0.000000e+00> : vector<64x256xf32>
    %40 = tpu.matmul %32, %39, %cst_26 {dimension_numbers = #tpu.dot_dimension_numbers<[1], [0], [0], [1], [0, 0, 1, 1], [], []>} : vector<64x192xf32>, vector<192x256xf32>, vector<64x256xf32> -> vector<64x256xf32>
    %41 = vector.broadcast %33 : vector<64x1xf32> to vector<64x256xf32>
    %42 = arith.addf %40, %41 : vector<64x256xf32>
    %cst_27 = arith.constant 0.000000e+00 : f32
    %43 = vector.broadcast %cst_27 : f32 to vector<64x256xf32>
    %44 = arith.maximumf %42, %43 : vector<64x256xf32>
    %cst_28 = arith.constant 0.000000e+00 : f32
    %45 = vector.broadcast %cst_28 : f32 to vector<64x1xf32>
    %46 = vector.extract_strided_slice %44 {offsets = [0, 0], sizes = [64, 255], strides = [1, 1]} : vector<64x256xf32> to vector<64x255xf32>
    %47 = tpu.concatenate %45, %46 in 1 : vector<64x1xf32>, vector<64x255xf32> -> vector<64x256xf32>
    %48 = vector.extract_strided_slice %44 {offsets = [0, 1], sizes = [64, 255], strides = [1, 1]} : vector<64x256xf32> to vector<64x255xf32>
    %49 = tpu.concatenate %48, %45 in 1 : vector<64x255xf32>, vector<64x1xf32> -> vector<64x256xf32>
    %c0_29 = arith.constant 0 : index
    %c0_30 = arith.constant 0 : index
    %50 = vector.load %arg10[%c0_29, %c0_30] : memref<20x64xf32, #tpu.memory_space<vmem>>, vector<20x64xf32>
    %cst_31 = arith.constant dense<0.000000e+00> : vector<20x256xf32>
    %51 = tpu.matmul %50, %44, %cst_31 {dimension_numbers = #tpu.dot_dimension_numbers<[1], [0], [0], [1], [0, 0, 1, 1], [], []>} : vector<20x64xf32>, vector<64x256xf32>, vector<20x256xf32> -> vector<20x256xf32>
    %c0_32 = arith.constant 0 : index
    %c0_33 = arith.constant 0 : index
    %52 = vector.load %arg13[%c0_32, %c0_33] : memref<20x1xf32, #tpu.memory_space<vmem>>, vector<20x1xf32>
    %53 = vector.broadcast %52 : vector<20x1xf32> to vector<20x256xf32>
    %54 = arith.addf %51, %53 : vector<20x256xf32>
    %c0_34 = arith.constant 0 : index
    %c0_35 = arith.constant 0 : index
    %55 = vector.load %arg11[%c0_34, %c0_35] : memref<20x64xf32, #tpu.memory_space<vmem>>, vector<20x64xf32>
    %56 = arith.subf %47, %44 : vector<64x256xf32>
    %cst_36 = arith.constant dense<0.000000e+00> : vector<20x256xf32>
    %57 = tpu.matmul %55, %56, %cst_36 {dimension_numbers = #tpu.dot_dimension_numbers<[1], [0], [0], [1], [0, 0, 1, 1], [], []>} : vector<20x64xf32>, vector<64x256xf32>, vector<20x256xf32> -> vector<20x256xf32>
    %58 = arith.addf %54, %57 : vector<20x256xf32>
    %c0_37 = arith.constant 0 : index
    %c0_38 = arith.constant 0 : index
    %59 = vector.load %arg12[%c0_37, %c0_38] : memref<20x64xf32, #tpu.memory_space<vmem>>, vector<20x64xf32>
    %60 = arith.subf %49, %44 : vector<64x256xf32>
    %cst_39 = arith.constant dense<0.000000e+00> : vector<20x256xf32>
    %61 = tpu.matmul %59, %60, %cst_39 {dimension_numbers = #tpu.dot_dimension_numbers<[1], [0], [0], [1], [0, 0, 1, 1], [], []>} : vector<20x64xf32>, vector<64x256xf32>, vector<20x256xf32> -> vector<20x256xf32>
    %62 = arith.addf %54, %61 : vector<20x256xf32>
    %c0_40 = arith.constant 0 : index
    %c0_41 = arith.constant 0 : index
    %c0_42 = arith.constant 0 : index
    %c0_43 = arith.constant 0 : index
    %63 = vector.load %arg14[%c0_40, %c0_41, %c0_42, %c0_43] : memref<1x8x20x256xf32, #tpu.memory_space<vmem>>, vector<1x1x20x256xf32>
    %64 = vector.shape_cast %63 : vector<1x1x20x256xf32> to vector<20x256xf32>
    %65 = vector.shape_cast %58 : vector<20x256xf32> to vector<1x1x20x256xf32>
    tpu.vector_store %arg14[%c0_40, %c0_41, %c0_42, %c0_43], %65 {strides = array<i32>} : memref<1x8x20x256xf32, #tpu.memory_space<vmem>>, vector<1x1x20x256xf32>,
    %c0_44 = arith.constant 0 : index
    %c1 = arith.constant 1 : index
    %c0_45 = arith.constant 0 : index
    %c0_46 = arith.constant 0 : index
    %66 = vector.load %arg14[%c0_44, %c1, %c0_45, %c0_46] : memref<1x8x20x256xf32, #tpu.memory_space<vmem>>, vector<1x1x20x256xf32>
    %67 = vector.shape_cast %66 : vector<1x1x20x256xf32> to vector<20x256xf32>
    %68 = vector.shape_cast %54 : vector<20x256xf32> to vector<1x1x20x256xf32>
    tpu.vector_store %arg14[%c0_44, %c1, %c0_45, %c0_46], %68 {strides = array<i32>} : memref<1x8x20x256xf32, #tpu.memory_space<vmem>>, vector<1x1x20x256xf32>,
    %c0_47 = arith.constant 0 : index
    %c2 = arith.constant 2 : index
    %c0_48 = arith.constant 0 : index
    %c0_49 = arith.constant 0 : index
    %69 = vector.load %arg14[%c0_47, %c2, %c0_48, %c0_49] : memref<1x8x20x256xf32, #tpu.memory_space<vmem>>, vector<1x1x20x256xf32>
    %70 = vector.shape_cast %69 : vector<1x1x20x256xf32> to vector<20x256xf32>
    %71 = vector.shape_cast %54 : vector<20x256xf32> to vector<1x1x20x256xf32>
    tpu.vector_store %arg14[%c0_47, %c2, %c0_48, %c0_49], %71 {strides = array<i32>} : memref<1x8x20x256xf32, #tpu.memory_space<vmem>>, vector<1x1x20x256xf32>,
    %c0_50 = arith.constant 0 : index
    %c3 = arith.constant 3 : index
    %c0_51 = arith.constant 0 : index
    %c0_52 = arith.constant 0 : index
    %72 = vector.load %arg14[%c0_50, %c3, %c0_51, %c0_52] : memref<1x8x20x256xf32, #tpu.memory_space<vmem>>, vector<1x1x20x256xf32>
    %73 = vector.shape_cast %72 : vector<1x1x20x256xf32> to vector<20x256xf32>
    %74 = vector.shape_cast %54 : vector<20x256xf32> to vector<1x1x20x256xf32>
    tpu.vector_store %arg14[%c0_50, %c3, %c0_51, %c0_52], %74 {strides = array<i32>} : memref<1x8x20x256xf32, #tpu.memory_space<vmem>>, vector<1x1x20x256xf32>,
    %c0_53 = arith.constant 0 : index
    %c4 = arith.constant 4 : index
    %c0_54 = arith.constant 0 : index
    %c0_55 = arith.constant 0 : index
    %75 = vector.load %arg14[%c0_53, %c4, %c0_54, %c0_55] : memref<1x8x20x256xf32, #tpu.memory_space<vmem>>, vector<1x1x20x256xf32>
    %76 = vector.shape_cast %75 : vector<1x1x20x256xf32> to vector<20x256xf32>
    %77 = vector.shape_cast %54 : vector<20x256xf32> to vector<1x1x20x256xf32>
    tpu.vector_store %arg14[%c0_53, %c4, %c0_54, %c0_55], %77 {strides = array<i32>} : memref<1x8x20x256xf32, #tpu.memory_space<vmem>>, vector<1x1x20x256xf32>,
    %c0_56 = arith.constant 0 : index
    %c5 = arith.constant 5 : index
    %c0_57 = arith.constant 0 : index
    %c0_58 = arith.constant 0 : index
    %78 = vector.load %arg14[%c0_56, %c5, %c0_57, %c0_58] : memref<1x8x20x256xf32, #tpu.memory_space<vmem>>, vector<1x1x20x256xf32>
    %79 = vector.shape_cast %78 : vector<1x1x20x256xf32> to vector<20x256xf32>
    %80 = vector.shape_cast %54 : vector<20x256xf32> to vector<1x1x20x256xf32>
    tpu.vector_store %arg14[%c0_56, %c5, %c0_57, %c0_58], %80 {strides = array<i32>} : memref<1x8x20x256xf32, #tpu.memory_space<vmem>>, vector<1x1x20x256xf32>,
    %c0_59 = arith.constant 0 : index
    %c6 = arith.constant 6 : index
    %c0_60 = arith.constant 0 : index
    %c0_61 = arith.constant 0 : index
    %81 = vector.load %arg14[%c0_59, %c6, %c0_60, %c0_61] : memref<1x8x20x256xf32, #tpu.memory_space<vmem>>, vector<1x1x20x256xf32>
    %82 = vector.shape_cast %81 : vector<1x1x20x256xf32> to vector<20x256xf32>
    %83 = vector.shape_cast %54 : vector<20x256xf32> to vector<1x1x20x256xf32>
    tpu.vector_store %arg14[%c0_59, %c6, %c0_60, %c0_61], %83 {strides = array<i32>} : memref<1x8x20x256xf32, #tpu.memory_space<vmem>>, vector<1x1x20x256xf32>,
    %c0_62 = arith.constant 0 : index
    %c7 = arith.constant 7 : index
    %c0_63 = arith.constant 0 : index
    %c0_64 = arith.constant 0 : index
    %84 = vector.load %arg14[%c0_62, %c7, %c0_63, %c0_64] : memref<1x8x20x256xf32, #tpu.memory_space<vmem>>, vector<1x1x20x256xf32>
    %85 = vector.shape_cast %84 : vector<1x1x20x256xf32> to vector<20x256xf32>
    %86 = vector.shape_cast %62 : vector<20x256xf32> to vector<1x1x20x256xf32>
    tpu.vector_store %arg14[%c0_62, %c7, %c0_63, %c0_64], %86 {strides = array<i32>} : memref<1x8x20x256xf32, #tpu.memory_space<vmem>>, vector<1x1x20x256xf32>,
    return
  }
  func.func @transform_0(%arg0: i32) -> (i32, i32, i32) {
    %c0_i32 = arith.constant 0 : i32
    %c0_i32_0 = arith.constant 0 : i32
    %c0_i32_1 = arith.constant 0 : i32
    return %arg0, %c0_i32, %c0_i32_0 : i32, i32, i32
  }
  func.func @transform_1(%arg0: i32) -> (i32, i32) {
    %c0_i32 = arith.constant 0 : i32
    %c0_i32_0 = arith.constant 0 : i32
    %c0_i32_1 = arith.constant 0 : i32
    return %c0_i32, %c0_i32_0 : i32, i32
  }
  func.func @transform_2(%arg0: i32) -> (i32, i32) {
    %c0_i32 = arith.constant 0 : i32
    %c0_i32_0 = arith.constant 0 : i32
    %c0_i32_1 = arith.constant 0 : i32
    return %c0_i32, %c0_i32_0 : i32, i32
  }
  func.func @transform_3(%arg0: i32) -> (i32, i32) {
    %c0_i32 = arith.constant 0 : i32
    %c0_i32_0 = arith.constant 0 : i32
    %c0_i32_1 = arith.constant 0 : i32
    return %c0_i32, %c0_i32_0 : i32, i32
  }
  func.func @transform_4(%arg0: i32) -> (i32, i32) {
    %c0_i32 = arith.constant 0 : i32
    %c0_i32_0 = arith.constant 0 : i32
    %c0_i32_1 = arith.constant 0 : i32
    return %c0_i32, %c0_i32_0 : i32, i32
  }
  func.func @transform_5(%arg0: i32) -> (i32, i32) {
    %c0_i32 = arith.constant 0 : i32
    %c0_i32_0 = arith.constant 0 : i32
    %c0_i32_1 = arith.constant 0 : i32
    return %c0_i32, %c0_i32_0 : i32, i32
  }
  func.func @transform_6(%arg0: i32) -> (i32, i32) {
    %c0_i32 = arith.constant 0 : i32
    %c0_i32_0 = arith.constant 0 : i32
    %c0_i32_1 = arith.constant 0 : i32
    return %c0_i32, %c0_i32_0 : i32, i32
  }
  func.func @transform_7(%arg0: i32) -> (i32, i32) {
    %c0_i32 = arith.constant 0 : i32
    %c0_i32_0 = arith.constant 0 : i32
    %c0_i32_1 = arith.constant 0 : i32
    return %c0_i32, %c0_i32_0 : i32, i32
  }
  func.func @transform_8(%arg0: i32) -> (i32, i32) {
    %c0_i32 = arith.constant 0 : i32
    %c0_i32_0 = arith.constant 0 : i32
    %c0_i32_1 = arith.constant 0 : i32
    return %c0_i32, %c0_i32_0 : i32, i32
  }
  func.func @transform_9(%arg0: i32) -> (i32, i32) {
    %c0_i32 = arith.constant 0 : i32
    %c0_i32_0 = arith.constant 0 : i32
    %c0_i32_1 = arith.constant 0 : i32
    return %c0_i32, %c0_i32_0 : i32, i32
  }
  func.func @transform_10(%arg0: i32) -> (i32, i32) {
    %c0_i32 = arith.constant 0 : i32
    %c0_i32_0 = arith.constant 0 : i32
    %c0_i32_1 = arith.constant 0 : i32
    return %c0_i32, %c0_i32_0 : i32, i32
  }
  func.func @transform_11(%arg0: i32) -> (i32, i32) {
    %c0_i32 = arith.constant 0 : i32
    %c0_i32_0 = arith.constant 0 : i32
    %c0_i32_1 = arith.constant 0 : i32
    return %c0_i32, %c0_i32_0 : i32, i32
  }
  func.func @transform_12(%arg0: i32) -> (i32, i32) {
    %c0_i32 = arith.constant 0 : i32
    %c0_i32_0 = arith.constant 0 : i32
    %c0_i32_1 = arith.constant 0 : i32
    return %c0_i32, %c0_i32_0 : i32, i32
  }
  func.func @transform_13(%arg0: i32) -> (i32, i32, i32, i32) {
    %c0_i32 = arith.constant 0 : i32
    %c0_i32_0 = arith.constant 0 : i32
    %c0_i32_1 = arith.constant 0 : i32
    %c0_i32_2 = arith.constant 0 : i32
    return %arg0, %c0_i32, %c0_i32_0, %c0_i32_1 : i32, i32, i32, i32
  }
}

</mosaic_0001>

<llo_original>
// kernel: decoder_forward.1
$region0: #{decoder_forward.1}
  #allocation0 [shape = 'u32[]', space=smem, size = 0x4, offset = 0x4, fixed_abs, tag = 'smem constant byte address 0x4 - core index']
  #allocation1 [shape = 'u32[144,128]{1,0:T(1,128)}', space=vmem, size = 0x12000, scoped, tag = 'internal scratch']
  %s0 = inlined_call_operand.hbm [shape: f32[2,4,8], index: 0, kind: input, shape index: {}]
  %s1 = inlined_call_operand.vmem [shape: f32[64,12], index: 1, kind: input, shape index: {}]
  %s2 = inlined_call_operand.vmem [shape: f32[64,1], index: 2, kind: input, shape index: {}]
  %s3 = inlined_call_operand.vmem [shape: f32[64,192], index: 3, kind: input, shape index: {}]
  %s4 = inlined_call_operand.vmem [shape: f32[64,1], index: 4, kind: input, shape index: {}]
  %s5 = inlined_call_operand.vmem [shape: f32[64,192], index: 5, kind: input, shape index: {}]
  %s6 = inlined_call_operand.vmem [shape: f32[64,1], index: 6, kind: input, shape index: {}]
  %s7 = inlined_call_operand.vmem [shape: f32[8,32], index: 7, kind: input, shape index: {}]
  %s8 = inlined_call_operand.vmem [shape: f32[32,256], index: 8, kind: input, shape index: {}]
  %s9 = inlined_call_operand.vmem [shape: f32[20,64], index: 9, kind: input, shape index: {}]
  %s10 = inlined_call_operand.vmem [shape: f32[20,64], index: 10, kind: input, shape index: {}]
  %s11 = inlined_call_operand.vmem [shape: f32[20,64], index: 11, kind: input, shape index: {}]
  %s12 = inlined_call_operand.vmem [shape: f32[20,1], index: 12, kind: input, shape index: {}]
  %s13 = inlined_call_operand.vmem [shape: f32[2,8,20,256], index: 13, kind: output, shape index: {}]
  %s14 = sld [smem:[#allocation0]]
  $region89: #{decoder_forward.1} parent=0
    _
  %s16 = ssub.s32 1, %s14
  %s17 = scalar_select 0, %s16, %s14
  $region1: #{decoder_forward.1} parent=0
    #allocation2 [shape = 'u8[4096]{0}', space=vmem, size = 0x1000, scoped, tag = 'input window, operand 0']
    #allocation3 [shape = 's32[2]{0}', space=sflag, size = 0x8, scoped, tag = 'scoped memory for decoder_forward.1']
    %18 = vsyncpa [#allocation3], 0
    %s19 = scalar_lea.sflag [#allocation3], 1
    %20 = vsyncpa %s19, 0
    loop: start=0, step=1, limit=4
    $region2: #{decoder_forward.1} parent=1 // loop_pre_header
      _
    $region3: #{decoder_forward.1} parent=1 // loop_header
      %s22 = sphi 0, %s26
      %p23 = scmp.ge.s32.totalorder %s22, 4
      %s32 = sphi 0, %s34
      %s35 = sphi 0, %s32
      %s36 = sphi 0, %s35
      %s52 = sphi 0, %s36
      %s56 = sphi 0, %s56
      %s58 = sphi 0, %s56
      %s59 = sphi 0, %s58
      %s73 = sphi 0, %s59
      %s77 = sphi 0, %s77
      %s79 = sphi 0, %s77
      %s80 = sphi 0, %s79
      %s94 = sphi 0, %s80
      %s98 = sphi 0, %s98
      %s100 = sphi 0, %s98
      %s101 = sphi 0, %s100
      %s115 = sphi 0, %s101
      %s119 = sphi 0, %s119
      %s121 = sphi 0, %s119
      %s122 = sphi 0, %s121
      %s136 = sphi 0, %s122
      %s140 = sphi 0, %s140
      %s142 = sphi 0, %s140
      %s143 = sphi 0, %s142
      %s157 = sphi 0, %s143
      %s161 = sphi 0, %s161
      %s163 = sphi 0, %s161
      %s164 = sphi 0, %s163
      %s178 = sphi 0, %s164
      %s182 = sphi 0, %s182
      %s184 = sphi 0, %s182
      %s185 = sphi 0, %s184
      %s199 = sphi 0, %s185
      %s203 = sphi 0, %s203
      %s205 = sphi 0, %s203
      %s206 = sphi 0, %s205
      %s220 = sphi 0, %s206
      %s224 = sphi 0, %s224
      %s226 = sphi 0, %s224
      %s227 = sphi 0, %s226
      %s241 = sphi 0, %s227
      %s245 = sphi 0, %s245
      %s247 = sphi 0, %s245
      %s248 = sphi 0, %s247
      %s262 = sphi 0, %s248
      %s266 = sphi 0, %s266
      %s268 = sphi 0, %s266
      %s269 = sphi 0, %s268
      %s283 = sphi 0, %s269
      %s287 = sphi 0, %s287
      %s289 = sphi 0, %s287
      %s290 = sphi 0, %s289
      %s304 = sphi 0, %s290
      %s310 = sphi 0, %s312
      %s313 = sphi 0, %s310
      %s314 = sphi 0, %s313
      %s330 = sphi 0, %s314
    $region4: #{decoder_forward.1} parent=1 // loop_header_branch
      %25 = sbr.rel (%p23) target = $region8
    $region5: #{decoder_forward.1} parent=1 // loop_body
      %s27 = ssub.s32 %s22, 1
      %s28 = ssub.s32 %s22, 2
      %s29 = sadd.s32 %s22, 1
      %s30 = ssub.s32 %s22, %s29
      %p31 = scmp.eq.s32.totalorder %s30, 0
      %s33 = sadd.s32 %s32, 1
      %s34 = scalar_select %p31, %s32, %s33
      %p37 = pneg %p31
      %p38 = scmp.eq.s32.totalorder %s22, 1
      %p39 = por %p37, %p38
      %p40 = scmp.ne.s32.totalorder %s32, %s35
      %p41 = scmp.eq.s32.totalorder %s22, 0
      %p42 = por %p40, %p41
      %p43 = scmp.ne.s32.totalorder %s32, %s35
      %p44 = scmp.eq.s32.totalorder %s27, 1
      %p45 = por %p43, %p44
      %p46 = scmp.ne.s32.totalorder %s35, %s36
      %p47 = scmp.eq.s32.totalorder %s27, 0
      %p48 = por %p46, %p47
      %p49 = scmp.ne.s32.totalorder %s35, %s36
      %p50 = scmp.eq.s32.totalorder %s28, 1
      %p51 = por %p49, %p50
      %p53 = scmp.ne.s32.totalorder %s36, %s52
      %p54 = scmp.eq.s32.totalorder %s28, 0
      %p55 = por %p53, %p54
      %s57 = sadd.s32 %s56, 1
      %p60 = scmp.eq.s32.totalorder %s22, 1
      %p61 = scmp.ne.s32.totalorder %s56, %s58
      %p62 = scmp.eq.s32.totalorder %s22, 0
      %p63 = por %p61, %p62
      %p64 = scmp.ne.s32.totalorder %s56, %s58
      %p65 = scmp.eq.s32.totalorder %s27, 1
      %p66 = por %p64, %p65
      %p67 = scmp.ne.s32.totalorder %s58, %s59
      %p68 = scmp.eq.s32.totalorder %s27, 0
      %p69 = por %p67, %p68
      %p70 = scmp.ne.s32.totalorder %s58, %s59
      %p71 = scmp.eq.s32.totalorder %s28, 1
      %p72 = por %p70, %p71
      %p74 = scmp.ne.s32.totalorder %s59, %s73
      %p75 = scmp.eq.s32.totalorder %s28, 0
      %p76 = por %p74, %p75
      %s78 = sadd.s32 %s77, 1
      %p81 = scmp.eq.s32.totalorder %s22, 1
      %p82 = scmp.ne.s32.totalorder %s77, %s79
      %p83 = scmp.eq.s32.totalorder %s22, 0
      %p84 = por %p82, %p83
      %p85 = scmp.ne.s32.totalorder %s77, %s79
      %p86 = scmp.eq.s32.totalorder %s27, 1
      %p87 = por %p85, %p86
      %p88 = scmp.ne.s32.totalorder %s79, %s80
      %p89 = scmp.eq.s32.totalorder %s27, 0
      %p90 = por %p88, %p89
      %p91 = scmp.ne.s32.totalorder %s79, %s80
      %p92 = scmp.eq.s32.totalorder %s28, 1
      %p93 = por %p91, %p92
      %p95 = scmp.ne.s32.totalorder %s80, %s94
      %p96 = scmp.eq.s32.totalorder %s28, 0
      %p97 = por %p95, %p96
      %s99 = sadd.s32 %s98, 1
      %p102 = scmp.eq.s32.totalorder %s22, 1
      %p103 = scmp.ne.s32.totalorder %s98, %s100
      %p104 = scmp.eq.s32.totalorder %s22, 0
      %p105 = por %p103, %p104
      %p106 = scmp.ne.s32.totalorder %s98, %s100
      %p107 = scmp.eq.s32.totalorder %s27, 1
      %p108 = por %p106, %p107
      %p109 = scmp.ne.s32.totalorder %s100, %s101
      %p110 = scmp.eq.s32.totalorder %s27, 0
      %p111 = por %p109, %p110
      %p112 = scmp.ne.s32.totalorder %s100, %s101
      %p113 = scmp.eq.s32.totalorder %s28, 1
      %p114 = por %p112, %p113
      %p116 = scmp.ne.s32.totalorder %s101, %s115
      %p117 = scmp.eq.s32.totalorder %s28, 0
      %p118 = por %p116, %p117
      %s120 = sadd.s32 %s119, 1
      %p123 = scmp.eq.s32.totalorder %s22, 1
      %p124 = scmp.ne.s32.totalorder %s119, %s121
      %p125 = scmp.eq.s32.totalorder %s22, 0
      %p126 = por %p124, %p125
      %p127 = scmp.ne.s32.totalorder %s119, %s121
      %p128 = scmp.eq.s32.totalorder %s27, 1
      %p129 = por %p127, %p128
      %p130 = scmp.ne.s32.totalorder %s121, %s122
      %p131 = scmp.eq.s32.totalorder %s27, 0
      %p132 = por %p130, %p131
      %p133 = scmp.ne.s32.totalorder %s121, %s122
      %p134 = scmp.eq.s32.totalorder %s28, 1
      %p135 = por %p133, %p134
      %p137 = scmp.ne.s32.totalorder %s122, %s136
      %p138 = scmp.eq.s32.totalorder %s28, 0
      %p139 = por %p137, %p138
      %s141 = sadd.s32 %s140, 1
      %p144 = scmp.eq.s32.totalorder %s22, 1
      %p145 = scmp.ne.s32.totalorder %s140, %s142
      %p146 = scmp.eq.s32.totalorder %s22, 0
      %p147 = por %p145, %p146
      %p148 = scmp.ne.s32.totalorder %s140, %s142
      %p149 = scmp.eq.s32.totalorder %s27, 1
      %p150 = por %p148, %p149
      %p151 = scmp.ne.s32.totalorder %s142, %s143
      %p152 = scmp.eq.s32.totalorder %s27, 0
      %p153 = por %p151, %p152
      %p154 = scmp.ne.s32.totalorder %s142, %s143
      %p155 = scmp.eq.s32.totalorder %s28, 1
      %p156 = por %p154, %p155
      %p158 = scmp.ne.s32.totalorder %s143, %s157
      %p159 = scmp.eq.s32.totalorder %s28, 0
      %p160 = por %p158, %p159
      %s162 = sadd.s32 %s161, 1
      %p165 = scmp.eq.s32.totalorder %s22, 1
      %p166 = scmp.ne.s32.totalorder %s161, %s163
      %p167 = scmp.eq.s32.totalorder %s22, 0
      %p168 = por %p166, %p167
      %p169 = scmp.ne.s32.totalorder %s161, %s163
      %p170 = scmp.eq.s32.totalorder %s27, 1
      %p171 = por %p169, %p170
      %p172 = scmp.ne.s32.totalorder %s163, %s164
      %p173 = scmp.eq.s32.totalorder %s27, 0
      %p174 = por %p172, %p173
      %p175 = scmp.ne.s32.totalorder %s163, %s164
      %p176 = scmp.eq.s32.totalorder %s28, 1
      %p177 = por %p175, %p176
      %p179 = scmp.ne.s32.totalorder %s164, %s178
      %p180 = scmp.eq.s32.totalorder %s28, 0
      %p181 = por %p179, %p180
      %s183 = sadd.s32 %s182, 1
      %p186 = scmp.eq.s32.totalorder %s22, 1
      %p187 = scmp.ne.s32.totalorder %s182, %s184
      %p188 = scmp.eq.s32.totalorder %s22, 0
      %p189 = por %p187, %p188
      %p190 = scmp.ne.s32.totalorder %s182, %s184
      %p191 = scmp.eq.s32.totalorder %s27, 1
      %p192 = por %p190, %p191
      %p193 = scmp.ne.s32.totalorder %s184, %s185
      %p194 = scmp.eq.s32.totalorder %s27, 0
      %p195 = por %p193, %p194
      %p196 = scmp.ne.s32.totalorder %s184, %s185
      %p197 = scmp.eq.s32.totalorder %s28, 1
      %p198 = por %p196, %p197
      %p200 = scmp.ne.s32.totalorder %s185, %s199
      %p201 = scmp.eq.s32.totalorder %s28, 0
      %p202 = por %p200, %p201
      %s204 = sadd.s32 %s203, 1
      %p207 = scmp.eq.s32.totalorder %s22, 1
      %p208 = scmp.ne.s32.totalorder %s203, %s205
      %p209 = scmp.eq.s32.totalorder %s22, 0
      %p210 = por %p208, %p209
      %p211 = scmp.ne.s32.totalorder %s203, %s205
      %p212 = scmp.eq.s32.totalorder %s27, 1
      %p213 = por %p211, %p212
      %p214 = scmp.ne.s32.totalorder %s205, %s206
      %p215 = scmp.eq.s32.totalorder %s27, 0
      %p216 = por %p214, %p215
      %p217 = scmp.ne.s32.totalorder %s205, %s206
      %p218 = scmp.eq.s32.totalorder %s28, 1
      %p219 = por %p217, %p218
      %p221 = scmp.ne.s32.totalorder %s206, %s220
      %p222 = scmp.eq.s32.totalorder %s28, 0
      %p223 = por %p221, %p222
      %s225 = sadd.s32 %s224, 1
      %p228 = scmp.eq.s32.totalorder %s22, 1
      %p229 = scmp.ne.s32.totalorder %s224, %s226
      %p230 = scmp.eq.s32.totalorder %s22, 0
      %p231 = por %p229, %p230
      %p232 = scmp.ne.s32.totalorder %s224, %s226
      %p233 = scmp.eq.s32.totalorder %s27, 1
      %p234 = por %p232, %p233
      %p235 = scmp.ne.s32.totalorder %s226, %s227
      %p236 = scmp.eq.s32.totalorder %s27, 0
      %p237 = por %p235, %p236
      %p238 = scmp.ne.s32.totalorder %s226, %s227
      %p239 = scmp.eq.s32.totalorder %s28, 1
      %p240 = por %p238, %p239
      %p242 = scmp.ne.s32.totalorder %s227, %s241
      %p243 = scmp.eq.s32.totalorder %s28, 0
      %p244 = por %p242, %p243
      %s246 = sadd.s32 %s245, 1
      %p249 = scmp.eq.s32.totalorder %s22, 1
      %p250 = scmp.ne.s32.totalorder %s245, %s247
      %p251 = scmp.eq.s32.totalorder %s22, 0
      %p252 = por %p250, %p251
      %p253 = scmp.ne.s32.totalorder %s245, %s247
      %p254 = scmp.eq.s32.totalorder %s27, 1
      %p255 = por %p253, %p254
      %p256 = scmp.ne.s32.totalorder %s247, %s248
      %p257 = scmp.eq.s32.totalorder %s27, 0
      %p258 = por %p256, %p257
      %p259 = scmp.ne.s32.totalorder %s247, %s248
      %p260 = scmp.eq.s32.totalorder %s28, 1
      %p261 = por %p259, %p260
      %p263 = scmp.ne.s32.totalorder %s248, %s262
      %p264 = scmp.eq.s32.totalorder %s28, 0
      %p265 = por %p263, %p264
      %s267 = sadd.s32 %s266, 1
      %p270 = scmp.eq.s32.totalorder %s22, 1
      %p271 = scmp.ne.s32.totalorder %s266, %s268
      %p272 = scmp.eq.s32.totalorder %s22, 0
      %p273 = por %p271, %p272
      %p274 = scmp.ne.s32.totalorder %s266, %s268
      %p275 = scmp.eq.s32.totalorder %s27, 1
      %p276 = por %p274, %p275
      %p277 = scmp.ne.s32.totalorder %s268, %s269
      %p278 = scmp.eq.s32.totalorder %s27, 0
      %p279 = por %p277, %p278
      %p280 = scmp.ne.s32.totalorder %s268, %s269
      %p281 = scmp.eq.s32.totalorder %s28, 1
      %p282 = por %p280, %p281
      %p284 = scmp.ne.s32.totalorder %s269, %s283
      %p285 = scmp.eq.s32.totalorder %s28, 0
      %p286 = por %p284, %p285
      %s288 = sadd.s32 %s287, 1
      %p291 = scmp.eq.s32.totalorder %s22, 1
      %p292 = scmp.ne.s32.totalorder %s287, %s289
      %p293 = scmp.eq.s32.totalorder %s22, 0
      %p294 = por %p292, %p293
      %p295 = scmp.ne.s32.totalorder %s287, %s289
      %p296 = scmp.eq.s32.totalorder %s27, 1
      %p297 = por %p295, %p296
      %p298 = scmp.ne.s32.totalorder %s289, %s290
      %p299 = scmp.eq.s32.totalorder %s27, 0
      %p300 = por %p298, %p299
      %p301 = scmp.ne.s32.totalorder %s289, %s290
      %p302 = scmp.eq.s32.totalorder %s28, 1
      %p303 = por %p301, %p302
      %p305 = scmp.ne.s32.totalorder %s290, %s304
      %p306 = scmp.eq.s32.totalorder %s28, 0
      %p307 = por %p305, %p306
      %s308 = ssub.s32 %s22, %s29
      %p309 = scmp.eq.s32.totalorder %s308, 0
      %s311 = sadd.s32 %s310, 1
      %s312 = scalar_select %p309, %s310, %s311
      %p315 = pneg %p309
      %p316 = scmp.eq.s32.totalorder %s22, 1
      %p317 = por %p315, %p316
      %p318 = scmp.ne.s32.totalorder %s310, %s313
      %p319 = scmp.eq.s32.totalorder %s22, 0
      %p320 = por %p318, %p319
      %p321 = scmp.ne.s32.totalorder %s310, %s313
      %p322 = scmp.eq.s32.totalorder %s27, 1
      %p323 = por %p321, %p322
      %p324 = scmp.ne.s32.totalorder %s313, %s314
      %p325 = scmp.eq.s32.totalorder %s27, 0
      %p326 = por %p324, %p325
      %p327 = scmp.ne.s32.totalorder %s313, %s314
      %p328 = scmp.eq.s32.totalorder %s28, 1
      %p329 = por %p327, %p328
      %p331 = scmp.ne.s32.totalorder %s314, %s330
      %p332 = scmp.eq.s32.totalorder %s28, 0
      %p333 = por %p331, %p332
      %p334 = scmp.le.s32.totalorder 1, %s22
      %p335 = scmp.lt.s32.totalorder %s22, 3
      %p336 = pnand %p334, %p335
      %p337 = pneg %p336
      // Predicated region
      $region9: #{decoder_forward.1} parent=5 // pred_check
        _
      $region10: #{decoder_forward.1} parent=5 // pred_check_branch
        %339 = sbr.rel (%p336) target = $region12
      $region11: #{decoder_forward.1} parent=5 // pred_region
        %s340 = ssub.s32 %s22, 1
        // Predicated region
        $region13: #{decoder_forward.1} parent=11 // pred_check
          %p341 = pneg %p69
        $region14: #{decoder_forward.1} parent=11 // pred_check_branch
          %343 = sbr.rel (%p341) target = $region16
        $region15: #{decoder_forward.1} parent=11 // pred_region
          _
        $region16: #{decoder_forward.1} parent=11 // pred_fallthru
          _
        // Predicated region
        $region17: #{decoder_forward.1} parent=11 // pred_check
          %p344 = pneg %p90
        $region18: #{decoder_forward.1} parent=11 // pred_check_branch
          %346 = sbr.rel (%p344) target = $region20
        $region19: #{decoder_forward.1} parent=11 // pred_region
          _
        $region20: #{decoder_forward.1} parent=11 // pred_fallthru
          _
        // Predicated region
        $region21: #{decoder_forward.1} parent=11 // pred_check
          %p347 = pneg %p111
        $region22: #{decoder_forward.1} parent=11 // pred_check_branch
          %349 = sbr.rel (%p347) target = $region24
        $region23: #{decoder_forward.1} parent=11 // pred_region
          _
        $region24: #{decoder_forward.1} parent=11 // pred_fallthru
          _
        // Predicated region
        $region25: #{decoder_forward.1} parent=11 // pred_check
          %p350 = pneg %p132
        $region26: #{decoder_forward.1} parent=11 // pred_check_branch
          %352 = sbr.rel (%p350) target = $region28
        $region27: #{decoder_forward.1} parent=11 // pred_region
          _
        $region28: #{decoder_forward.1} parent=11 // pred_fallthru
          _
        // Predicated region
        $region29: #{decoder_forward.1} parent=11 // pred_check
          %p353 = pneg %p153
        $region30: #{decoder_forward.1} parent=11 // pred_check_branch
          %355 = sbr.rel (%p353) target = $region32
        $region31: #{decoder_forward.1} parent=11 // pred_region
          _
        $region32: #{decoder_forward.1} parent=11 // pred_fallthru
          _
        // Predicated region
        $region33: #{decoder_forward.1} parent=11 // pred_check
          %p356 = pneg %p174
        $region34: #{decoder_forward.1} parent=11 // pred_check_branch
          %358 = sbr.rel (%p356) target = $region36
        $region35: #{decoder_forward.1} parent=11 // pred_region
          _
        $region36: #{decoder_forward.1} parent=11 // pred_fallthru
          _
        // Predicated region
        $region37: #{decoder_forward.1} parent=11 // pred_check
          %p359 = pneg %p195
        $region38: #{decoder_forward.1} parent=11 // pred_check_branch
          %361 = sbr.rel (%p359) target = $region40
        $region39: #{decoder_forward.1} parent=11 // pred_region
          _
        $region40: #{decoder_forward.1} parent=11 // pred_fallthru
          _
        // Predicated region
        $region41: #{decoder_forward.1} parent=11 // pred_check
          %p362 = pneg %p216
        $region42: #{decoder_forward.1} parent=11 // pred_check_branch
          %364 = sbr.rel (%p362) target = $region44
        $region43: #{decoder_forward.1} parent=11 // pred_region
          _
        $region44: #{decoder_forward.1} parent=11 // pred_fallthru
          _
        // Predicated region
        $region45: #{decoder_forward.1} parent=11 // pred_check
          %p365 = pneg %p237
        $region46: #{decoder_forward.1} parent=11 // pred_check_branch
          %367 = sbr.rel (%p365) target = $region48
        $region47: #{decoder_forward.1} parent=11 // pred_region
          _
        $region48: #{decoder_forward.1} parent=11 // pred_fallthru
          _
        // Predicated region
        $region49: #{decoder_forward.1} parent=11 // pred_check
          %p368 = pneg %p258
        $region50: #{decoder_forward.1} parent=11 // pred_check_branch
          %370 = sbr.rel (%p368) target = $region52
        $region51: #{decoder_forward.1} parent=11 // pred_region
          _
        $region52: #{decoder_forward.1} parent=11 // pred_fallthru
          _
        // Predicated region
        $region53: #{decoder_forward.1} parent=11 // pred_check
          %p371 = pneg %p279
        $region54: #{decoder_forward.1} parent=11 // pred_check_branch
          %373 = sbr.rel (%p371) target = $region56
        $region55: #{decoder_forward.1} parent=11 // pred_region
          _
        $region56: #{decoder_forward.1} parent=11 // pred_fallthru
          _
        // Predicated region
        $region57: #{decoder_forward.1} parent=11 // pred_check
          %p374 = pneg %p300
        $region58: #{decoder_forward.1} parent=11 // pred_check_branch
          %376 = sbr.rel (%p374) target = $region60
        $region59: #{decoder_forward.1} parent=11 // pred_region
          _
        $region60: #{decoder_forward.1} parent=11 // pred_fallthru
          _
      $region12: #{decoder_forward.1} parent=5 // pred_fallthru
        _
      %p377 = scmp.lt.s32.totalorder %s22, 2
      // Predicated region
      $region61: #{decoder_forward.1} parent=5 // pred_check
        %p378 = pneg %p377
      $region62: #{decoder_forward.1} parent=5 // pred_check_branch
        %380 = sbr.rel (%p378) target = $region64
      $region63: #{decoder_forward.1} parent=5 // pred_region
        // Predicated region
        $region65: #{decoder_forward.1} parent=63 // pred_check
          %p381 = pneg %p42
        $region66: #{decoder_forward.1} parent=63 // pred_check_branch
          %383 = sbr.rel (%p381) target = $region68
        $region67: #{decoder_forward.1} parent=63 // pred_region
          %s384 = sand.u32 %s32, 1
          %s385 = scalar_lea.sflag [#allocation3], %s384
          %s386 = sand.u32 %s32, 1
          %s387 = smul.addr %s386, 4
          %s388 = scalar_lea.vmem [#allocation2], %s387
          %s390 = ssub.s32 64, 64
          %391 = vsyncadd %s385, %s390
          %s392 = smul.addr %s22, 64
          %s393 = scalar_lea.hbm %s0, %s392
          %s395 = sshll.u32 %s388, 4
          %s396 = int_to_ptr.vmem [resolvable:$true] %s395
          %398 = dma.hbm_to_vmem [thread:$0]  %s393, 64, %s396, %s385
        $region68: #{decoder_forward.1} parent=63 // pred_fallthru
          _
      $region64: #{decoder_forward.1} parent=5 // pred_fallthru
        _
      %p399 = scmp.le.s32.totalorder 1, %s22
      %p400 = scmp.lt.s32.totalorder %s22, 3
      %p401 = pnand %p399, %p400
      %p402 = pneg %p401
      // Predicated region
      $region69: #{decoder_forward.1} parent=5 // pred_check
        _
      $region70: #{decoder_forward.1} parent=5 // pred_check_branch
        %404 = sbr.rel (%p401) target = $region72
      $region71: #{decoder_forward.1} parent=5 // pred_region
        %s405 = ssub.s32 %s22, 1
        %s406 = sand.u32 %s35, 1
        %s407 = scalar_lea.sflag [#allocation3], %s406
        %s408 = sand.u32 %s35, 1
        %s409 = smul.addr %s408, 4
        %s410 = scalar_lea.vmem [#allocation2], %s409
        // Predicated region
        $region73: #{decoder_forward.1} parent=71 // pred_check
          %p411 = pneg %p48
        $region74: #{decoder_forward.1} parent=71 // pred_check_branch
          %413 = sbr.rel (%p411) target = $region76
        $region75: #{decoder_forward.1} parent=71 // pred_region
          %414 = dma.done %s407, 64
        $region76: #{decoder_forward.1} parent=71 // pred_fallthru
          _
        %s415 = sand.u32 %s35, 1
        %s416 = scalar_lea.sflag [#allocation3], %s415
        %s417 = sand.u32 %s35, 1
        %s418 = smul.addr %s417, 4
        %s419 = scalar_lea.vmem [#allocation2], %s418
        %p420 = pneg %p48
        %p421 = pneg %p45
        %p422 = pneg %p69
        %p423 = pneg %p66
        %p424 = pneg %p90
        %p425 = pneg %p87
        %p426 = pneg %p111
        %p427 = pneg %p108
        %p428 = pneg %p132
        %p429 = pneg %p129
        %p430 = pneg %p153
        %p431 = pneg %p150
        %p432 = pneg %p174
        %p433 = pneg %p171
        %p434 = pneg %p195
        %p435 = pneg %p192
        %p436 = pneg %p216
        %p437 = pneg %p213
        %p438 = pneg %p237
        %p439 = pneg %p234
        %p440 = pneg %p258
        %p441 = pneg %p255
        %p442 = pneg %p279
        %p443 = pneg %p276
        %p444 = pneg %p300
        %p445 = pneg %p297
        %p446 = pneg %p326
        %p447 = pneg %p323
        %p448 = scmp.lt.s32.totalorder %s27, 1
        %s449 = scalar_select %p448, %s27, 1
        %s450 = smul.addr %s449, 48
        %s451 = smul.addr %s450, 8
        %s452 = scalar_lea.vmem %s13, %s451
        %p453 = scmp.lt.s32.totalorder %s27, 1
        %s454 = scalar_select %p453, %s27, 1
        %s455 = smul.addr %s454, 48
        %s456 = smul.addr %s455, 8
        %s457 = scalar_lea.vmem %s13, %s456
        %v458 = vld [vmem:[%s410] sm:$0xf]
        %v459 = vld [vmem:[%s1] sm:$0xff]
        %v460 = vld [vmem:[%s1 + $0x8] sm:$0xff]
        %v461 = vld [vmem:[%s1 + $0x10] sm:$0xff]
        %v462 = vld [vmem:[%s1 + $0x18] sm:$0xff]
        %v463 = vld [vmem:[%s1 + $0x20] sm:$0xff]
        %v464 = vld [vmem:[%s1 + $0x28] sm:$0xff]
        %v465 = vld [vmem:[%s1 + $0x30] sm:$0xff]
        %v466 = vld [vmem:[%s1 + $0x38] sm:$0xff]
        %v467 = vld [vmem:[%s2] sm:$0xff]
        %v468 = vld [vmem:[%s2 + $0x8] sm:$0xff]
        %v469 = vld [vmem:[%s2 + $0x10] sm:$0xff]
        %v470 = vld [vmem:[%s2 + $0x18] sm:$0xff]
        %v471 = vld [vmem:[%s2 + $0x20] sm:$0xff]
        %v472 = vld [vmem:[%s2 + $0x28] sm:$0xff]
        %v473 = vld [vmem:[%s2 + $0x30] sm:$0xff]
        %v474 = vld [vmem:[%s2 + $0x38] sm:$0xff]
        %476 = vrot.lane.b32.xlu0 %v458, 1
        %v477 = vpop.permute.xlu0 %476
        %vm479 = vcmask 7168
        %v480 = vsel %vm479, 0.0, %v477
        %481 = vrot.lane.b32.xlu0 %v458, 127
        %v482 = vpop.permute.xlu0 %481
        %vm484 = vcmask 56320
        %v485 = vsel %vm484, %v482, 0.0
        %v486 = vrot.slane %v458, 4
        %vm488 = vcmask 1043456
        %v489 = vsel %vm488, %v480, %v486
        %491 = vset.pattern.permute.xlu0 0
        %492 = vperm.xlu0 %491, %v467
        %v493 = vpop.permute.xlu0 %492
        %496 = vset.pattern.permute.xlu0 0
        %497 = vperm.xlu0 %496, %v468
        %v498 = vpop.permute.xlu0 %497
        %501 = vset.pattern.permute.xlu0 0
        %502 = vperm.xlu0 %501, %v469
        %v503 = vpop.permute.xlu0 %502
        %506 = vset.pattern.permute.xlu0 0
        %507 = vperm.xlu0 %506, %v470
        %v508 = vpop.permute.xlu0 %507
        %511 = vset.pattern.permute.xlu0 0
        %512 = vperm.xlu0 %511, %v471
        %v513 = vpop.permute.xlu0 %512
        %516 = vset.pattern.permute.xlu0 0
        %517 = vperm.xlu0 %516, %v472
        %v518 = vpop.permute.xlu0 %517
        %521 = vset.pattern.permute.xlu0 0
        %522 = vperm.xlu0 %521, %v473
        %v523 = vpop.permute.xlu0 %522
        %526 = vset.pattern.permute.xlu0 0
        %527 = vperm.xlu0 %526, %v474
        %v528 = vpop.permute.xlu0 %527
        %vm530 = vcmask 97280
        %v532 = vsel %vm530, %v459, 0
        %v535 = vsel %vm530, %v460, 0
        %v538 = vsel %vm530, %v461, 0
        %v541 = vsel %vm530, %v462, 0
        %v544 = vsel %vm530, %v463, 0
        %v547 = vsel %vm530, %v464, 0
        %v550 = vsel %vm530, %v465, 0
        %v553 = vsel %vm530, %v466, 0
        %v556 = vsel %vm488, %v485, 0
        %558 = vmatprep.subr.mxu0 0.0
        %559 = vmatpush1.msra.mxu0 %v489
        %560 = vmatprep.subr.mxu0 0.0
        %561 = vmatpush1.msra.mxu0 %v556
        %562 = vmatprep.subr.mxu0 0.0
        %563 = vmatpush1.msra.mxu0 0.0
        %564 = vmatprep.subr.mxu0 0.0
        %565 = vmatpush1.msra.mxu0 0.0
        %566 = vmatprep.subr.mxu0 0.0
        %567 = vmatpush1.msra.mxu0 0.0
        %568 = vmatprep.subr.mxu0 0.0
        %569 = vmatpush1.msra.mxu0 0.0
        %570 = vmatprep.subr.mxu0 0.0
        %571 = vmatpush1.msra.mxu0 0.0
        %572 = vmatprep.subr.mxu0 0.0
        %573 = vmatpush1.msra.mxu0 0.0
        %574 = vmatprep.subr.mxu0 0.0
        %575 = vmatpush1.msra.mxu0 0.0
        %576 = vmatprep.subr.mxu0 0.0
        %577 = vmatpush1.msra.mxu0 0.0
        %578 = vmatprep.subr.mxu0 0.0
        %579 = vmatpush1.msra.mxu0 0.0
        %580 = vmatprep.subr.mxu0 0.0
        %581 = vmatpush1.msra.mxu0 0.0
        %582 = vmatprep.subr.mxu0 0.0
        %583 = vmatpush1.msra.mxu0 0.0
        %584 = vmatprep.subr.mxu0 0.0
        %585 = vmatpush1.msra.mxu0 0.0
        %586 = vmatprep.subr.mxu0 0.0
        %587 = vmatpush1.msra.mxu0 0.0
        %588 = vmatprep.subr.mxu0 0.0
        %589 = vmatpush1.msra.mxu0 0.0
        %590 = vmatprep.subr.mxu0 0.0
        %591 = vmatpush1.msra.mxu0 0.0
        %592 = vmatprep.subr.mxu0 0.0
        %593 = vmatpush1.msra.mxu0 0.0
        %594 = vmatprep.subr.mxu0 0.0
        %595 = vmatpush1.msra.mxu0 0.0
        %596 = vmatprep.subr.mxu0 0.0
        %597 = vmatpush1.msra.mxu0 0.0
        %598 = vmatprep.subr.mxu0 0.0
        %599 = vmatpush1.msra.mxu0 0.0
        %600 = vmatprep.subr.mxu0 0.0
        %601 = vmatpush1.msra.mxu0 0.0
        %602 = vmatprep.subr.mxu0 0.0
        %603 = vmatpush1.msra.mxu0 0.0
        %604 = vmatprep.subr.mxu0 0.0
        %605 = vmatpush1.msra.mxu0 0.0
        %606 = vmatprep.subr.mxu0 0.0
        %607 = vmatpush1.msra.mxu0 0.0
        %608 = vmatprep.subr.mxu0 0.0
        %609 = vmatpush1.msra.mxu0 0.0
        %610 = vmatprep.subr.mxu0 0.0
        %611 = vmatpush1.msra.mxu0 0.0
        %612 = vmatprep.subr.mxu0 0.0
        %613 = vmatpush1.msra.mxu0 0.0
        %614 = vmatprep.subr.mxu0 0.0
        %615 = vmatpush1.msra.mxu0 0.0
        %616 = vmatprep.subr.mxu0 0.0
        %617 = vmatpush1.msra.mxu0 0.0
        %618 = vmatprep.subr.mxu0 0.0
        %619 = vmatpush1.msra.mxu0 0.0
        %620 = vmatprep.subr.mxu0 0.0
        %621 = vmatpush1.msra.mxu0 0.0
        %622 = vmatprep.mubr.f32.mxu0 0.0
        %623 = vmatmul.mubr.f32.gmra.mrb[0].mxu0 %v532
        %v624 = vpop.f32.mrb[0].mxu0
        %v625 = vadd.f32 %v493, %v624
        %v626 = vpop.f32.mrb[0].mxu0
        %627 = vmatprep.mubr.f32.mxu0 0.0
        %628 = vmatmul.mubr.f32.gmra.mrb[0].mxu0 %v535
        %v629 = vpop.f32.mrb[0].mxu0
        %v630 = vadd.f32 %v498, %v629
        %v631 = vpop.f32.mrb[0].mxu0
        %632 = vmatprep.mubr.f32.mxu0 0.0
        %633 = vmatmul.mubr.f32.gmra.mrb[0].mxu0 %v538
        %v634 = vpop.f32.mrb[0].mxu0
        %v635 = vadd.f32 %v503, %v634
        %v636 = vpop.f32.mrb[0].mxu0
        %637 = vmatprep.mubr.f32.mxu0 0.0
        %638 = vmatmul.mubr.f32.gmra.mrb[0].mxu0 %v541
        %v639 = vpop.f32.mrb[0].mxu0
        %v640 = vadd.f32 %v508, %v639
        %v641 = vpop.f32.mrb[0].mxu0
        %642 = vmatprep.mubr.f32.mxu0 0.0
        %643 = vmatmul.mubr.f32.gmra.mrb[0].mxu0 %v544
        %v644 = vpop.f32.mrb[0].mxu0
        %v645 = vadd.f32 %v513, %v644
        %v646 = vpop.f32.mrb[0].mxu0
        %647 = vmatprep.mubr.f32.mxu0 0.0
        %648 = vmatmul.mubr.f32.gmra.mrb[0].mxu0 %v547
        %v649 = vpop.f32.mrb[0].mxu0
        %v650 = vadd.f32 %v518, %v649
        %v651 = vpop.f32.mrb[0].mxu0
        %652 = vmatprep.mubr.f32.mxu0 0.0
        %653 = vmatmul.mubr.f32.gmra.mrb[0].mxu0 %v550
        %v654 = vpop.f32.mrb[0].mxu0
        %v655 = vadd.f32 %v523, %v654
        %v656 = vpop.f32.mrb[0].mxu0
        %657 = vmatprep.mubr.f32.mxu0 0.0
        %658 = vmatmul.mubr.f32.gmra.mrb[0].mxu0 %v553
        %v659 = vpop.f32.mrb[0].mxu0
        %v660 = vadd.f32 %v528, %v659
        %v661 = vpop.f32.mrb[0].mxu0
        %662 = vdwg.mxu0
        %v663 = vmax.f32 %v625, 0.0
        %v664 = vmax.f32 %v630, 0.0
        %v665 = vmax.f32 %v635, 0.0
        %v666 = vmax.f32 %v640, 0.0
        %v667 = vmax.f32 %v645, 0.0
        %v668 = vmax.f32 %v650, 0.0
        %v669 = vmax.f32 %v655, 0.0
        %v670 = vmax.f32 %v660, 0.0
        %v671 = vld [vmem:[%s7] sm:$0xff]
        %vm672 = vcmask 64512
        %v674 = vsel %vm672, %v663, 0
        %v677 = vsel %vm672, %v664, 0
        %v680 = vsel %vm672, %v665, 0
        %v683 = vsel %vm672, %v666, 0
        %v686 = vsel %vm672, %v667, 0
        %v689 = vsel %vm672, %v668, 0
        %v692 = vsel %vm672, %v669, 0
        %v695 = vsel %vm672, %v670, 0
        %697 = vmatprep.subr.mxu0 0.0
        %698 = vmatpush1.msra.mxu0 %v671
        %699 = vmatprep.subr.mxu0 0.0
        %700 = vmatpush1.msra.mxu0 0.0
        %701 = vmatprep.subr.mxu0 0.0
        %702 = vmatpush1.msra.mxu0 0.0
        %703 = vmatprep.subr.mxu0 0.0
        %704 = vmatpush1.msra.mxu0 0.0
        %705 = vmatprep.subr.mxu0 0.0
        %706 = vmatpush1.msra.mxu0 0.0
        %707 = vmatprep.subr.mxu0 0.0
        %708 = vmatpush1.msra.mxu0 0.0
        %709 = vmatprep.subr.mxu0 0.0
        %710 = vmatpush1.msra.mxu0 0.0
        %711 = vmatprep.subr.mxu0 0.0
        %712 = vmatpush1.msra.mxu0 0.0
        %713 = vmatprep.subr.mxu0 0.0
        %714 = vmatpush1.msra.mxu0 0.0
        %715 = vmatprep.subr.mxu0 0.0
        %716 = vmatpush1.msra.mxu0 0.0
        %717 = vmatprep.subr.mxu0 0.0
        %718 = vmatpush1.msra.mxu0 0.0
        %719 = vmatprep.subr.mxu0 0.0
        %720 = vmatpush1.msra.mxu0 0.0
        %721 = vmatprep.subr.mxu0 0.0
        %722 = vmatpush1.msra.mxu0 0.0
        %723 = vmatprep.subr.mxu0 0.0
        %724 = vmatpush1.msra.mxu0 0.0
        %725 = vmatprep.subr.mxu0 0.0
        %726 = vmatpush1.msra.mxu0 0.0
        %727 = vmatprep.subr.mxu0 0.0
        %728 = vmatpush1.msra.mxu0 0.0
        %729 = vmatprep.subr.mxu0 0.0
        %730 = vmatpush1.msra.mxu0 0.0
        %731 = vmatprep.subr.mxu0 0.0
        %732 = vmatpush1.msra.mxu0 0.0
        %733 = vmatprep.subr.mxu0 0.0
        %734 = vmatpush1.msra.mxu0 0.0
        %735 = vmatprep.subr.mxu0 0.0
        %736 = vmatpush1.msra.mxu0 0.0
        %737 = vmatprep.subr.mxu0 0.0
        %738 = vmatpush1.msra.mxu0 0.0
        %739 = vmatprep.subr.mxu0 0.0
        %740 = vmatpush1.msra.mxu0 0.0
        %741 = vmatprep.subr.mxu0 0.0
        %742 = vmatpush1.msra.mxu0 0.0
        %743 = vmatprep.subr.mxu0 0.0
        %744 = vmatpush1.msra.mxu0 0.0
        %745 = vmatprep.subr.mxu0 0.0
        %746 = vmatpush1.msra.mxu0 0.0
        %747 = vmatprep.subr.mxu0 0.0
        %748 = vmatpush1.msra.mxu0 0.0
        %749 = vmatprep.subr.mxu0 0.0
        %750 = vmatpush1.msra.mxu0 0.0
        %751 = vmatprep.subr.mxu0 0.0
        %752 = vmatpush1.msra.mxu0 0.0
        %753 = vmatprep.subr.mxu0 0.0
        %754 = vmatpush1.msra.mxu0 0.0
        %755 = vmatprep.subr.mxu0 0.0
        %756 = vmatpush1.msra.mxu0 0.0
        %757 = vmatprep.subr.mxu0 0.0
        %758 = vmatpush1.msra.mxu0 0.0
        %759 = vmatprep.subr.mxu0 0.0
        %760 = vmatpush1.msra.mxu0 0.0
        %761 = vmatprep.mubr.f32.mxu0 0.0
        %762 = vmatmul.mubr.f32.gmra.mrb[0].mxu0 %v674
        %v763 = vpop.f32.mrb[0].mxu0
        %v764 = vadd.f32 0.0, %v763
        %v765 = vpop.f32.mrb[0].mxu0
        %766 = vmatprep.mubr.f32.mxu0 0.0
        %767 = vmatmul.mubr.f32.gmra.mrb[0].mxu0 %v677
        %v768 = vpop.f32.mrb[0].mxu0
        %v769 = vadd.f32 0.0, %v768
        %v770 = vpop.f32.mrb[0].mxu0
        %771 = vmatprep.mubr.f32.mxu0 0.0
        %772 = vmatmul.mubr.f32.gmra.mrb[0].mxu0 %v680
        %v773 = vpop.f32.mrb[0].mxu0
        %v774 = vadd.f32 0.0, %v773
        %v775 = vpop.f32.mrb[0].mxu0
        %776 = vmatprep.mubr.f32.mxu0 0.0
        %777 = vmatmul.mubr.f32.gmra.mrb[0].mxu0 %v683
        %v778 = vpop.f32.mrb[0].mxu0
        %v779 = vadd.f32 0.0, %v778
        %v780 = vpop.f32.mrb[0].mxu0
        %781 = vmatprep.mubr.f32.mxu0 0.0
        %782 = vmatmul.mubr.f32.gmra.mrb[0].mxu0 %v686
        %v783 = vpop.f32.mrb[0].mxu0
        %v784 = vadd.f32 0.0, %v783
        %v785 = vpop.f32.mrb[0].mxu0
        %786 = vmatprep.mubr.f32.mxu0 0.0
        %787 = vmatmul.mubr.f32.gmra.mrb[0].mxu0 %v689
        %v788 = vpop.f32.mrb[0].mxu0
        %v789 = vadd.f32 0.0, %v788
        %v790 = vpop.f32.mrb[0].mxu0
        %791 = vmatprep.mubr.f32.mxu0 0.0
        %792 = vmatmul.mubr.f32.gmra.mrb[0].mxu0 %v692
        %v793 = vpop.f32.mrb[0].mxu0
        %v794 = vadd.f32 0.0, %v793
        %v795 = vpop.f32.mrb[0].mxu0
        %796 = vmatprep.mubr.f32.mxu0 0.0
        %797 = vmatmul.mubr.f32.gmra.mrb[0].mxu0 %v695
        %v798 = vpop.f32.mrb[0].mxu0
        %v799 = vadd.f32 0.0, %v798
        %v800 = vpop.f32.mrb[0].mxu0
        %801 = vdwg.mxu0
        %v802 = vld [vmem:[%s3] sm:$0xff]
        %v803 = vld [vmem:[%s3 + $0x8] sm:$0xff]
        %v804 = vld [vmem:[%s3 + $0x10] sm:$0xff]
        %v805 = vld [vmem:[%s3 + $0x18] sm:$0xff]
        %v806 = vld [vmem:[%s3 + $0x20] sm:$0xff]
        %v807 = vld [vmem:[%s3 + $0x28] sm:$0xff]
        %v808 = vld [vmem:[%s3 + $0x30] sm:$0xff]
        %v809 = vld [vmem:[%s3 + $0x38] sm:$0xff]
        %v810 = vld [vmem:[%s3 + $0x40] sm:$0xff]
        %v811 = vld [vmem:[%s3 + $0x48] sm:$0xff]
        %v812 = vld [vmem:[%s3 + $0x50] sm:$0xff]
        %v813 = vld [vmem:[%s3 + $0x58] sm:$0xff]
        %v814 = vld [vmem:[%s3 + $0x60] sm:$0xff]
        %v815 = vld [vmem:[%s3 + $0x68] sm:$0xff]
        %v816 = vld [vmem:[%s3 + $0x70] sm:$0xff]
        %v817 = vld [vmem:[%s3 + $0x78] sm:$0xff]
        %v818 = vld [vmem:[%s4] sm:$0xff]
        %v819 = vld [vmem:[%s4 + $0x8] sm:$0xff]
        %v820 = vld [vmem:[%s4 + $0x10] sm:$0xff]
        %v821 = vld [vmem:[%s4 + $0x18] sm:$0xff]
        %v822 = vld [vmem:[%s4 + $0x20] sm:$0xff]
        %v823 = vld [vmem:[%s4 + $0x28] sm:$0xff]
        %v824 = vld [vmem:[%s4 + $0x30] sm:$0xff]
        %v825 = vld [vmem:[%s4 + $0x38] sm:$0xff]
        %834 = vrot.lane.b32.xlu0 %v764, 1
        %v835 = vpop.permute.xlu0 %834
        %836 = vrot.lane.b32.xlu0 %v769, 1
        %v837 = vpop.permute.xlu0 %836
        %838 = vrot.lane.b32.xlu0 %v774, 1
        %v839 = vpop.permute.xlu0 %838
        %840 = vrot.lane.b32.xlu0 %v779, 1
        %v841 = vpop.permute.xlu0 %840
        %842 = vrot.lane.b32.xlu0 %v784, 1
        %v843 = vpop.permute.xlu0 %842
        %844 = vrot.lane.b32.xlu0 %v789, 1
        %v845 = vpop.permute.xlu0 %844
        %846 = vrot.lane.b32.xlu0 %v794, 1
        %v847 = vpop.permute.xlu0 %846
        %848 = vrot.lane.b32.xlu0 %v799, 1
        %v849 = vpop.permute.xlu0 %848
        %v858 = vsel %vm479, 0.0, %v835
        %v859 = vsel %vm479, 0.0, %v837
        %v860 = vsel %vm479, 0.0, %v839
        %v861 = vsel %vm479, 0.0, %v841
        %v862 = vsel %vm479, 0.0, %v843
        %v863 = vsel %vm479, 0.0, %v845
        %v864 = vsel %vm479, 0.0, %v847
        %v865 = vsel %vm479, 0.0, %v849
        %866 = vrot.lane.b32.xlu0 %v764, 127
        %v867 = vpop.permute.xlu0 %866
        %868 = vrot.lane.b32.xlu0 %v769, 127
        %v869 = vpop.permute.xlu0 %868
        %870 = vrot.lane.b32.xlu0 %v774, 127
        %v871 = vpop.permute.xlu0 %870
        %872 = vrot.lane.b32.xlu0 %v779, 127
        %v873 = vpop.permute.xlu0 %872
        %874 = vrot.lane.b32.xlu0 %v784, 127
        %v875 = vpop.permute.xlu0 %874
        %876 = vrot.lane.b32.xlu0 %v789, 127
        %v877 = vpop.permute.xlu0 %876
        %878 = vrot.lane.b32.xlu0 %v794, 127
        %v879 = vpop.permute.xlu0 %878
        %880 = vrot.lane.b32.xlu0 %v799, 127
        %v881 = vpop.permute.xlu0 %880
        %vm890 = vcmask 252928
        %v891 = vsel %vm890, %v867, 0.0
        %v892 = vsel %vm890, %v869, 0.0
        %v893 = vsel %vm890, %v871, 0.0
        %v894 = vsel %vm890, %v873, 0.0
        %v895 = vsel %vm890, %v875, 0.0
        %v896 = vsel %vm890, %v877, 0.0
        %v897 = vsel %vm890, %v879, 0.0
        %v898 = vsel %vm890, %v881, 0.0
        %900 = vset.pattern.permute.xlu0 0
        %901 = vperm.xlu0 %900, %v818
        %v902 = vpop.permute.xlu0 %901
        %905 = vset.pattern.permute.xlu0 0
        %906 = vperm.xlu0 %905, %v819
        %v907 = vpop.permute.xlu0 %906
        %910 = vset.pattern.permute.xlu0 0
        %911 = vperm.xlu0 %910, %v820
        %v912 = vpop.permute.xlu0 %911
        %915 = vset.pattern.permute.xlu0 0
        %916 = vperm.xlu0 %915, %v821
        %v917 = vpop.permute.xlu0 %916
        %920 = vset.pattern.permute.xlu0 0
        %921 = vperm.xlu0 %920, %v822
        %v922 = vpop.permute.xlu0 %921
        %925 = vset.pattern.permute.xlu0 0
        %926 = vperm.xlu0 %925, %v823
        %v927 = vpop.permute.xlu0 %926
        %930 = vset.pattern.permute.xlu0 0
        %931 = vperm.xlu0 %930, %v824
        %v932 = vpop.permute.xlu0 %931
        %935 = vset.pattern.permute.xlu0 0
        %936 = vperm.xlu0 %935, %v825
        %v937 = vpop.permute.xlu0 %936
        %vm939 = vcmask 523264
        %v941 = vsel %vm939, %v803, 0
        %v944 = vsel %vm939, %v805, 0
        %v947 = vsel %vm939, %v807, 0
        %v950 = vsel %vm939, %v809, 0
        %v953 = vsel %vm939, %v811, 0
        %v956 = vsel %vm939, %v813, 0
        %v959 = vsel %vm939, %v815, 0
        %v962 = vsel %vm939, %v817, 0
        %964 = vmatprep.subr.mxu0 0.0
        %965 = vmatpush1.msra.mxu0 %v858
        %966 = vmatprep.subr.mxu0 0.0
        %967 = vmatpush1.msra.mxu0 %v859
        %968 = vmatprep.subr.mxu0 0.0
        %969 = vmatpush1.msra.mxu0 %v860
        %970 = vmatprep.subr.mxu0 0.0
        %971 = vmatpush1.msra.mxu0 %v861
        %972 = vmatprep.subr.mxu0 0.0
        %973 = vmatpush1.msra.mxu0 %v862
        %974 = vmatprep.subr.mxu0 0.0
        %975 = vmatpush1.msra.mxu0 %v863
        %976 = vmatprep.subr.mxu0 0.0
        %977 = vmatpush1.msra.mxu0 %v864
        %978 = vmatprep.subr.mxu0 0.0
        %979 = vmatpush1.msra.mxu0 %v865
        %980 = vmatprep.subr.mxu0 0.0
        %981 = vmatpush1.msra.mxu0 %v764
        %982 = vmatprep.subr.mxu0 0.0
        %983 = vmatpush1.msra.mxu0 %v769
        %984 = vmatprep.subr.mxu0 0.0
        %985 = vmatpush1.msra.mxu0 %v774
        %986 = vmatprep.subr.mxu0 0.0
        %987 = vmatpush1.msra.mxu0 %v779
        %988 = vmatprep.subr.mxu0 0.0
        %989 = vmatpush1.msra.mxu0 %v784
        %990 = vmatprep.subr.mxu0 0.0
        %991 = vmatpush1.msra.mxu0 %v789
        %992 = vmatprep.subr.mxu0 0.0
        %993 = vmatpush1.msra.mxu0 %v794
        %994 = vmatprep.subr.mxu0 0.0
        %995 = vmatpush1.msra.mxu0 %v799
        %996 = vmatprep.subr.mxu0 0.0
        %997 = vmatpush1.msra.mxu0 %v891
        %998 = vmatprep.subr.mxu0 0.0
        %999 = vmatpush1.msra.mxu0 %v892
        %1000 = vmatprep.subr.mxu0 0.0
        %1001 = vmatpush1.msra.mxu0 %v893
        %1002 = vmatprep.subr.mxu0 0.0
        %1003 = vmatpush1.msra.mxu0 %v894
        %1004 = vmatprep.subr.mxu0 0.0
        %1005 = vmatpush1.msra.mxu0 %v895
        %1006 = vmatprep.subr.mxu0 0.0
        %1007 = vmatpush1.msra.mxu0 %v896
        %1008 = vmatprep.subr.mxu0 0.0
        %1009 = vmatpush1.msra.mxu0 %v897
        %1010 = vmatprep.subr.mxu0 0.0
        %1011 = vmatpush1.msra.mxu0 %v898
        %1012 = vmatprep.subr.mxu0 0.0
        %1013 = vmatpush1.msra.mxu0 0.0
        %1014 = vmatprep.subr.mxu0 0.0
        %1015 = vmatpush1.msra.mxu0 0.0
        %1016 = vmatprep.subr.mxu0 0.0
        %1017 = vmatpush1.msra.mxu0 0.0
        %1018 = vmatprep.subr.mxu0 0.0
        %1019 = vmatpush1.msra.mxu0 0.0
        %1020 = vmatprep.subr.mxu0 0.0
        %1021 = vmatpush1.msra.mxu0 0.0
        %1022 = vmatprep.subr.mxu0 0.0
        %1023 = vmatpush1.msra.mxu0 0.0
        %1024 = vmatprep.subr.mxu0 0.0
        %1025 = vmatpush1.msra.mxu0 0.0
        %1026 = vmatprep.subr.mxu0 0.0
        %1027 = vmatpush1.msra.mxu0 0.0
        %1028 = vmatprep.mubr.f32.mxu0 %v941
        %1029 = vmatmul.mubr.f32.gmra.mrb[0].mxu0 %v802
        %v1030 = vpop.f32.mrb[0].mxu0
        %v1031 = vadd.f32 %v902, %v1030
        %v1032 = vpop.f32.mrb[0].mxu0
        %1033 = vmatprep.mubr.f32.mxu0 %v944
        %1034 = vmatmul.mubr.f32.gmra.mrb[0].mxu0 %v804
        %v1035 = vpop.f32.mrb[0].mxu0
        %v1036 = vadd.f32 %v907, %v1035
        %v1037 = vpop.f32.mrb[0].mxu0
        %1038 = vmatprep.mubr.f32.mxu0 %v947
        %1039 = vmatmul.mubr.f32.gmra.mrb[0].mxu0 %v806
        %v1040 = vpop.f32.mrb[0].mxu0
        %v1041 = vadd.f32 %v912, %v1040
        %v1042 = vpop.f32.mrb[0].mxu0
        %1043 = vmatprep.mubr.f32.mxu0 %v950
        %1044 = vmatmul.mubr.f32.gmra.mrb[0].mxu0 %v808
        %v1045 = vpop.f32.mrb[0].mxu0
        %v1046 = vadd.f32 %v917, %v1045
        %v1047 = vpop.f32.mrb[0].mxu0
        %1048 = vmatprep.mubr.f32.mxu0 %v953
        %1049 = vmatmul.mubr.f32.gmra.mrb[0].mxu0 %v810
        %v1050 = vpop.f32.mrb[0].mxu0
        %v1051 = vadd.f32 %v922, %v1050
        %v1052 = vpop.f32.mrb[0].mxu0
        %1053 = vmatprep.mubr.f32.mxu0 %v956
        %1054 = vmatmul.mubr.f32.gmra.mrb[0].mxu0 %v812
        %v1055 = vpop.f32.mrb[0].mxu0
        %v1056 = vadd.f32 %v927, %v1055
        %v1057 = vpop.f32.mrb[0].mxu0
        %1058 = vmatprep.mubr.f32.mxu0 %v959
        %1059 = vmatmul.mubr.f32.gmra.mrb[0].mxu0 %v814
        %v1060 = vpop.f32.mrb[0].mxu0
        %v1061 = vadd.f32 %v932, %v1060
        %v1062 = vpop.f32.mrb[0].mxu0
        %1063 = vmatprep.mubr.f32.mxu0 %v962
        %1064 = vmatmul.mubr.f32.gmra.mrb[0].mxu0 %v816
        %v1065 = vpop.f32.mrb[0].mxu0
        %v1066 = vadd.f32 %v937, %v1065
        %v1067 = vpop.f32.mrb[0].mxu0
        %1068 = vdwg.mxu0
        %v1069 = vmax.f32 %v1031, 0.0
        %v1070 = vmax.f32 %v1036, 0.0
        %v1071 = vmax.f32 %v1041, 0.0
        %v1072 = vmax.f32 %v1046, 0.0
        %v1073 = vmax.f32 %v1051, 0.0
        %v1074 = vmax.f32 %v1056, 0.0
        %v1075 = vmax.f32 %v1061, 0.0
        %v1076 = vmax.f32 %v1066, 0.0
        %v1077 = vld [vmem:[%s8] sm:$0xff]
        %v1078 = vld [vmem:[%s8 + $0x8] sm:$0xff]
        %v1079 = vld [vmem:[%s8 + $0x10] sm:$0xff]
        %v1080 = vld [vmem:[%s8 + $0x18] sm:$0xff]
        %v1081 = vld [vmem:[%s8 + $0x20] sm:$0xff]
        %v1082 = vld [vmem:[%s8 + $0x28] sm:$0xff]
        %v1083 = vld [vmem:[%s8 + $0x30] sm:$0xff]
        %v1084 = vld [vmem:[%s8 + $0x38] sm:$0xff]
        %vm1085 = vcmask 261120
        %v1087 = vsel %vm1085, %v1069, 0
        %v1090 = vsel %vm1085, %v1070, 0
        %v1093 = vsel %vm1085, %v1071, 0
        %v1096 = vsel %vm1085, %v1072, 0
        %v1099 = vsel %vm1085, %v1073, 0
        %v1102 = vsel %vm1085, %v1074, 0
        %v1105 = vsel %vm1085, %v1075, 0
        %v1108 = vsel %vm1085, %v1076, 0
        %1110 = vmatprep.subr.mxu0 %v1078
        %1111 = vmatpush1.msra.mxu0 %v1077
        %1112 = vmatprep.subr.mxu0 %v1080
        %1113 = vmatpush1.msra.mxu0 %v1079
        %1114 = vmatprep.subr.mxu0 %v1082
        %1115 = vmatpush1.msra.mxu0 %v1081
        %1116 = vmatprep.subr.mxu0 %v1084
        %1117 = vmatpush1.msra.mxu0 %v1083
        %1118 = vmatprep.subr.mxu0 0.0
        %1119 = vmatpush1.msra.mxu0 0.0
        %1120 = vmatprep.subr.mxu0 0.0
        %1121 = vmatpush1.msra.mxu0 0.0
        %1122 = vmatprep.subr.mxu0 0.0
        %1123 = vmatpush1.msra.mxu0 0.0
        %1124 = vmatprep.subr.mxu0 0.0
        %1125 = vmatpush1.msra.mxu0 0.0
        %1126 = vmatprep.subr.mxu0 0.0
        %1127 = vmatpush1.msra.mxu0 0.0
        %1128 = vmatprep.subr.mxu0 0.0
        %1129 = vmatpush1.msra.mxu0 0.0
        %1130 = vmatprep.subr.mxu0 0.0
        %1131 = vmatpush1.msra.mxu0 0.0
        %1132 = vmatprep.subr.mxu0 0.0
        %1133 = vmatpush1.msra.mxu0 0.0
        %1134 = vmatprep.subr.mxu0 0.0
        %1135 = vmatpush1.msra.mxu0 0.0
        %1136 = vmatprep.subr.mxu0 0.0
        %1137 = vmatpush1.msra.mxu0 0.0
        %1138 = vmatprep.subr.mxu0 0.0
        %1139 = vmatpush1.msra.mxu0 0.0
        %1140 = vmatprep.subr.mxu0 0.0
        %1141 = vmatpush1.msra.mxu0 0.0
        %1142 = vmatprep.subr.mxu0 0.0
        %1143 = vmatpush1.msra.mxu0 0.0
        %1144 = vmatprep.subr.mxu0 0.0
        %1145 = vmatpush1.msra.mxu0 0.0
        %1146 = vmatprep.subr.mxu0 0.0
        %1147 = vmatpush1.msra.mxu0 0.0
        %1148 = vmatprep.subr.mxu0 0.0
        %1149 = vmatpush1.msra.mxu0 0.0
        %1150 = vmatprep.subr.mxu0 0.0
        %1151 = vmatpush1.msra.mxu0 0.0
        %1152 = vmatprep.subr.mxu0 0.0
        %1153 = vmatpush1.msra.mxu0 0.0
        %1154 = vmatprep.subr.mxu0 0.0
        %1155 = vmatpush1.msra.mxu0 0.0
        %1156 = vmatprep.subr.mxu0 0.0
        %1157 = vmatpush1.msra.mxu0 0.0
        %1158 = vmatprep.subr.mxu0 0.0
        %1159 = vmatpush1.msra.mxu0 0.0
        %1160 = vmatprep.subr.mxu0 0.0
        %1161 = vmatpush1.msra.mxu0 0.0
        %1162 = vmatprep.subr.mxu0 0.0
        %1163 = vmatpush1.msra.mxu0 0.0
        %1164 = vmatprep.subr.mxu0 0.0
        %1165 = vmatpush1.msra.mxu0 0.0
        %1166 = vmatprep.subr.mxu0 0.0
        %1167 = vmatpush1.msra.mxu0 0.0
        %1168 = vmatprep.subr.mxu0 0.0
        %1169 = vmatpush1.msra.mxu0 0.0
        %1170 = vmatprep.subr.mxu0 0.0
        %1171 = vmatpush1.msra.mxu0 0.0
        %1172 = vmatprep.subr.mxu0 0.0
        %1173 = vmatpush1.msra.mxu0 0.0
        %1174 = vmatprep.mubr.f32.mxu0 0.0
        %1175 = vmatmul.mubr.f32.gmra.mrb[0].mxu0 %v1087
        %v1176 = vpop.f32.mrb[0].mxu0
        %v1177 = vadd.f32 0.0, %v1176
        %v1178 = vpop.f32.mrb[0].mxu0
        %v1179 = vadd.f32 0.0, %v1178
        %1180 = vmatprep.mubr.f32.mxu0 0.0
        %1181 = vmatmul.mubr.f32.gmra.mrb[0].mxu0 %v1090
        %v1182 = vpop.f32.mrb[0].mxu0
        %v1183 = vadd.f32 0.0, %v1182
        %v1184 = vpop.f32.mrb[0].mxu0
        %v1185 = vadd.f32 0.0, %v1184
        %1186 = vmatprep.mubr.f32.mxu0 0.0
        %1187 = vmatmul.mubr.f32.gmra.mrb[0].mxu0 %v1093
        %v1188 = vpop.f32.mrb[0].mxu0
        %v1189 = vadd.f32 0.0, %v1188
        %v1190 = vpop.f32.mrb[0].mxu0
        %v1191 = vadd.f32 0.0, %v1190
        %1192 = vmatprep.mubr.f32.mxu0 0.0
        %1193 = vmatmul.mubr.f32.gmra.mrb[0].mxu0 %v1096
        %v1194 = vpop.f32.mrb[0].mxu0
        %v1195 = vadd.f32 0.0, %v1194
        %v1196 = vpop.f32.mrb[0].mxu0
        %v1197 = vadd.f32 0.0, %v1196
        %1198 = vmatprep.mubr.f32.mxu0 0.0
        %1199 = vmatmul.mubr.f32.gmra.mrb[0].mxu0 %v1099
        %v1200 = vpop.f32.mrb[0].mxu0
        %v1201 = vadd.f32 0.0, %v1200
        %v1202 = vpop.f32.mrb[0].mxu0
        %v1203 = vadd.f32 0.0, %v1202
        %1204 = vmatprep.mubr.f32.mxu0 0.0
        %1205 = vmatmul.mubr.f32.gmra.mrb[0].mxu0 %v1102
        %v1206 = vpop.f32.mrb[0].mxu0
        %v1207 = vadd.f32 0.0, %v1206
        %v1208 = vpop.f32.mrb[0].mxu0
        %v1209 = vadd.f32 0.0, %v1208
        %1210 = vmatprep.mubr.f32.mxu0 0.0
        %1211 = vmatmul.mubr.f32.gmra.mrb[0].mxu0 %v1105
        %v1212 = vpop.f32.mrb[0].mxu0
        %v1213 = vadd.f32 0.0, %v1212
        %v1214 = vpop.f32.mrb[0].mxu0
        %v1215 = vadd.f32 0.0, %v1214
        %1216 = vmatprep.mubr.f32.mxu0 0.0
        %1217 = vmatmul.mubr.f32.gmra.mrb[0].mxu0 %v1108
        %v1218 = vpop.f32.mrb[0].mxu0
        %v1219 = vadd.f32 0.0, %v1218
        %v1220 = vpop.f32.mrb[0].mxu0
        %v1221 = vadd.f32 0.0, %v1220
        %1222 = vdwg.mxu0
        %v1223 = vld [vmem:[%s5] sm:$0xff]
        %v1224 = vld [vmem:[%s5 + $0x8] sm:$0xff]
        %v1225 = vld [vmem:[%s5 + $0x10] sm:$0xff]
        %v1226 = vld [vmem:[%s5 + $0x18] sm:$0xff]
        %v1227 = vld [vmem:[%s5 + $0x20] sm:$0xff]
        %v1228 = vld [vmem:[%s5 + $0x28] sm:$0xff]
        %v1229 = vld [vmem:[%s5 + $0x30] sm:$0xff]
        %v1230 = vld [vmem:[%s5 + $0x38] sm:$0xff]
        %v1231 = vld [vmem:[%s5 + $0x40] sm:$0xff]
        %v1232 = vld [vmem:[%s5 + $0x48] sm:$0xff]
        %v1233 = vld [vmem:[%s5 + $0x50] sm:$0xff]
        %v1234 = vld [vmem:[%s5 + $0x58] sm:$0xff]
        %v1235 = vld [vmem:[%s5 + $0x60] sm:$0xff]
        %v1236 = vld [vmem:[%s5 + $0x68] sm:$0xff]
        %v1237 = vld [vmem:[%s5 + $0x70] sm:$0xff]
        %v1238 = vld [vmem:[%s5 + $0x78] sm:$0xff]
        %v1239 = vld [vmem:[%s6] sm:$0xff]
        %v1240 = vld [vmem:[%s6 + $0x8] sm:$0xff]
        %v1241 = vld [vmem:[%s6 + $0x10] sm:$0xff]
        %v1242 = vld [vmem:[%s6 + $0x18] sm:$0xff]
        %v1243 = vld [vmem:[%s6 + $0x20] sm:$0xff]
        %v1244 = vld [vmem:[%s6 + $0x28] sm:$0xff]
        %v1245 = vld [vmem:[%s6 + $0x30] sm:$0xff]
        %v1246 = vld [vmem:[%s6 + $0x38] sm:$0xff]
        %1263 = vrot.lane.b32.xlu0 %v1177, 1
        %v1264 = vpop.permute.xlu0 %1263
        %1265 = vrot.lane.b32.xlu0 %v1179, 1
        %v1266 = vpop.permute.xlu0 %1265
        %1267 = vrot.lane.b32.xlu0 %v1183, 1
        %v1268 = vpop.permute.xlu0 %1267
        %1269 = vrot.lane.b32.xlu0 %v1185, 1
        %v1270 = vpop.permute.xlu0 %1269
        %1271 = vrot.lane.b32.xlu0 %v1189, 1
        %v1272 = vpop.permute.xlu0 %1271
        %1273 = vrot.lane.b32.xlu0 %v1191, 1
        %v1274 = vpop.permute.xlu0 %1273
        %1275 = vrot.lane.b32.xlu0 %v1195, 1
        %v1276 = vpop.permute.xlu0 %1275
        %1277 = vrot.lane.b32.xlu0 %v1197, 1
        %v1278 = vpop.permute.xlu0 %1277
        %1279 = vrot.lane.b32.xlu0 %v1201, 1
        %v1280 = vpop.permute.xlu0 %1279
        %1281 = vrot.lane.b32.xlu0 %v1203, 1
        %v1282 = vpop.permute.xlu0 %1281
        %1283 = vrot.lane.b32.xlu0 %v1207, 1
        %v1284 = vpop.permute.xlu0 %1283
        %1285 = vrot.lane.b32.xlu0 %v1209, 1
        %v1286 = vpop.permute.xlu0 %1285
        %1287 = vrot.lane.b32.xlu0 %v1213, 1
        %v1288 = vpop.permute.xlu0 %1287
        %1289 = vrot.lane.b32.xlu0 %v1215, 1
        %v1290 = vpop.permute.xlu0 %1289
        %1291 = vrot.lane.b32.xlu0 %v1219, 1
        %v1292 = vpop.permute.xlu0 %1291
        %1293 = vrot.lane.b32.xlu0 %v1221, 1
        %v1294 = vpop.permute.xlu0 %1293
        %v1295 = vsel %vm479, %v1264, %v1266
        %v1296 = vsel %vm479, %v1268, %v1270
        %v1297 = vsel %vm479, %v1272, %v1274
        %v1298 = vsel %vm479, %v1276, %v1278
        %v1299 = vsel %vm479, %v1280, %v1282
        %v1300 = vsel %vm479, %v1284, %v1286
        %v1301 = vsel %vm479, %v1288, %v1290
        %v1302 = vsel %vm479, %v1292, %v1294
        %v1319 = vsel %vm479, 0.0, %v1264
        %v1320 = vsel %vm479, 0.0, %v1268
        %v1321 = vsel %vm479, 0.0, %v1272
        %v1322 = vsel %vm479, 0.0, %v1276
        %v1323 = vsel %vm479, 0.0, %v1280
        %v1324 = vsel %vm479, 0.0, %v1284
        %v1325 = vsel %vm479, 0.0, %v1288
        %v1326 = vsel %vm479, 0.0, %v1292
        %1327 = vrot.lane.b32.xlu0 %v1177, 127
        %v1328 = vpop.permute.xlu0 %1327
        %1329 = vrot.lane.b32.xlu0 %v1179, 127
        %v1330 = vpop.permute.xlu0 %1329
        %1331 = vrot.lane.b32.xlu0 %v1183, 127
        %v1332 = vpop.permute.xlu0 %1331
        %1333 = vrot.lane.b32.xlu0 %v1185, 127
        %v1334 = vpop.permute.xlu0 %1333
        %1335 = vrot.lane.b32.xlu0 %v1189, 127
        %v1336 = vpop.permute.xlu0 %1335
        %1337 = vrot.lane.b32.xlu0 %v1191, 127
        %v1338 = vpop.permute.xlu0 %1337
        %1339 = vrot.lane.b32.xlu0 %v1195, 127
        %v1340 = vpop.permute.xlu0 %1339
        %1341 = vrot.lane.b32.xlu0 %v1197, 127
        %v1342 = vpop.permute.xlu0 %1341
        %1343 = vrot.lane.b32.xlu0 %v1201, 127
        %v1344 = vpop.permute.xlu0 %1343
        %1345 = vrot.lane.b32.xlu0 %v1203, 127
        %v1346 = vpop.permute.xlu0 %1345
        %1347 = vrot.lane.b32.xlu0 %v1207, 127
        %v1348 = vpop.permute.xlu0 %1347
        %1349 = vrot.lane.b32.xlu0 %v1209, 127
        %v1350 = vpop.permute.xlu0 %1349
        %1351 = vrot.lane.b32.xlu0 %v1213, 127
        %v1352 = vpop.permute.xlu0 %1351
        %1353 = vrot.lane.b32.xlu0 %v1215, 127
        %v1354 = vpop.permute.xlu0 %1353
        %1355 = vrot.lane.b32.xlu0 %v1219, 127
        %v1356 = vpop.permute.xlu0 %1355
        %1357 = vrot.lane.b32.xlu0 %v1221, 127
        %v1358 = vpop.permute.xlu0 %1357
        %vm1359 = vcmask 1039360
        %v1360 = vsel %vm1359, %v1328, %v1330
        %v1361 = vsel %vm1359, %v1332, %v1334
        %v1362 = vsel %vm1359, %v1336, %v1338
        %v1363 = vsel %vm1359, %v1340, %v1342
        %v1364 = vsel %vm1359, %v1344, %v1346
        %v1365 = vsel %vm1359, %v1348, %v1350
        %v1366 = vsel %vm1359, %v1352, %v1354
        %v1367 = vsel %vm1359, %v1356, %v1358
        %v1384 = vsel %vm1359, %v1330, 0.0
        %v1385 = vsel %vm1359, %v1334, 0.0
        %v1386 = vsel %vm1359, %v1338, 0.0
        %v1387 = vsel %vm1359, %v1342, 0.0
        %v1388 = vsel %vm1359, %v1346, 0.0
        %v1389 = vsel %vm1359, %v1350, 0.0
        %v1390 = vsel %vm1359, %v1354, 0.0
        %v1391 = vsel %vm1359, %v1358, 0.0
        %1393 = vset.pattern.permute.xlu0 0
        %1394 = vperm.xlu0 %1393, %v1239
        %v1395 = vpop.permute.xlu0 %1394
        %1398 = vset.pattern.permute.xlu0 0
        %1399 = vperm.xlu0 %1398, %v1240
        %v1400 = vpop.permute.xlu0 %1399
        %1403 = vset.pattern.permute.xlu0 0
        %1404 = vperm.xlu0 %1403, %v1241
        %v1405 = vpop.permute.xlu0 %1404
        %1408 = vset.pattern.permute.xlu0 0
        %1409 = vperm.xlu0 %1408, %v1242
        %v1410 = vpop.permute.xlu0 %1409
        %1413 = vset.pattern.permute.xlu0 0
        %1414 = vperm.xlu0 %1413, %v1243
        %v1415 = vpop.permute.xlu0 %1414
        %1418 = vset.pattern.permute.xlu0 0
        %1419 = vperm.xlu0 %1418, %v1244
        %v1420 = vpop.permute.xlu0 %1419
        %1423 = vset.pattern.permute.xlu0 0
        %1424 = vperm.xlu0 %1423, %v1245
        %v1425 = vpop.permute.xlu0 %1424
        %1428 = vset.pattern.permute.xlu0 0
        %1429 = vperm.xlu0 %1428, %v1246
        %v1430 = vpop.permute.xlu0 %1429
        %v1433 = vsel %vm939, %v1224, 0
        %v1436 = vsel %vm939, %v1226, 0
        %v1439 = vsel %vm939, %v1228, 0
        %v1442 = vsel %vm939, %v1230, 0
        %v1445 = vsel %vm939, %v1232, 0
        %v1448 = vsel %vm939, %v1234, 0
        %v1451 = vsel %vm939, %v1236, 0
        %v1454 = vsel %vm939, %v1238, 0
        %1456 = vmatprep.subr.mxu0 %v1295
        %1457 = vmatpush1.msra.mxu0 %v1319
        %1458 = vmatprep.subr.mxu0 %v1296
        %1459 = vmatpush1.msra.mxu0 %v1320
        %1460 = vmatprep.subr.mxu0 %v1297
        %1461 = vmatpush1.msra.mxu0 %v1321
        %1462 = vmatprep.subr.mxu0 %v1298
        %1463 = vmatpush1.msra.mxu0 %v1322
        %1464 = vmatprep.subr.mxu0 %v1299
        %1465 = vmatpush1.msra.mxu0 %v1323
        %1466 = vmatprep.subr.mxu0 %v1300
        %1467 = vmatpush1.msra.mxu0 %v1324
        %1468 = vmatprep.subr.mxu0 %v1301
        %1469 = vmatpush1.msra.mxu0 %v1325
        %1470 = vmatprep.subr.mxu0 %v1302
        %1471 = vmatpush1.msra.mxu0 %v1326
        %1472 = vmatprep.subr.mxu0 %v1179
        %1473 = vmatpush1.msra.mxu0 %v1177
        %1474 = vmatprep.subr.mxu0 %v1185
        %1475 = vmatpush1.msra.mxu0 %v1183
        %1476 = vmatprep.subr.mxu0 %v1191
        %1477 = vmatpush1.msra.mxu0 %v1189
        %1478 = vmatprep.subr.mxu0 %v1197
        %1479 = vmatpush1.msra.mxu0 %v1195
        %1480 = vmatprep.subr.mxu0 %v1203
        %1481 = vmatpush1.msra.mxu0 %v1201
        %1482 = vmatprep.subr.mxu0 %v1209
        %1483 = vmatpush1.msra.mxu0 %v1207
        %1484 = vmatprep.subr.mxu0 %v1215
        %1485 = vmatpush1.msra.mxu0 %v1213
        %1486 = vmatprep.subr.mxu0 %v1221
        %1487 = vmatpush1.msra.mxu0 %v1219
        %1488 = vmatprep.subr.mxu0 %v1384
        %1489 = vmatpush1.msra.mxu0 %v1360
        %1490 = vmatprep.subr.mxu0 %v1385
        %1491 = vmatpush1.msra.mxu0 %v1361
        %1492 = vmatprep.subr.mxu0 %v1386
        %1493 = vmatpush1.msra.mxu0 %v1362
        %1494 = vmatprep.subr.mxu0 %v1387
        %1495 = vmatpush1.msra.mxu0 %v1363
        %1496 = vmatprep.subr.mxu0 %v1388
        %1497 = vmatpush1.msra.mxu0 %v1364
        %1498 = vmatprep.subr.mxu0 %v1389
        %1499 = vmatpush1.msra.mxu0 %v1365
        %1500 = vmatprep.subr.mxu0 %v1390
        %1501 = vmatpush1.msra.mxu0 %v1366
        %1502 = vmatprep.subr.mxu0 %v1391
        %1503 = vmatpush1.msra.mxu0 %v1367
        %1504 = vmatprep.subr.mxu0 0.0
        %1505 = vmatpush1.msra.mxu0 0.0
        %1506 = vmatprep.subr.mxu0 0.0
        %1507 = vmatpush1.msra.mxu0 0.0
        %1508 = vmatprep.subr.mxu0 0.0
        %1509 = vmatpush1.msra.mxu0 0.0
        %1510 = vmatprep.subr.mxu0 0.0
        %1511 = vmatpush1.msra.mxu0 0.0
        %1512 = vmatprep.subr.mxu0 0.0
        %1513 = vmatpush1.msra.mxu0 0.0
        %1514 = vmatprep.subr.mxu0 0.0
        %1515 = vmatpush1.msra.mxu0 0.0
        %1516 = vmatprep.subr.mxu0 0.0
        %1517 = vmatpush1.msra.mxu0 0.0
        %1518 = vmatprep.subr.mxu0 0.0
        %1519 = vmatpush1.msra.mxu0 0.0
        %1520 = vmatprep.mubr.f32.mxu0 %v1433
        %1521 = vmatmul.mubr.f32.gmra.mrb[0].mxu0 %v1223
        %v1522 = vpop.f32.mrb[0].mxu0
        %v1523 = vadd.f32 %v1395, %v1522
        %v1524 = vpop.f32.mrb[0].mxu0
        %v1525 = vadd.f32 %v1395, %v1524
        %1526 = vmatprep.mubr.f32.mxu0 %v1436
        %1527 = vmatmul.mubr.f32.gmra.mrb[0].mxu0 %v1225
        %v1528 = vpop.f32.mrb[0].mxu0
        %v1529 = vadd.f32 %v1400, %v1528
        %v1530 = vpop.f32.mrb[0].mxu0
        %v1531 = vadd.f32 %v1400, %v1530
        %1532 = vmatprep.mubr.f32.mxu0 %v1439
        %1533 = vmatmul.mubr.f32.gmra.mrb[0].mxu0 %v1227
        %v1534 = vpop.f32.mrb[0].mxu0
        %v1535 = vadd.f32 %v1405, %v1534
        %v1536 = vpop.f32.mrb[0].mxu0
        %v1537 = vadd.f32 %v1405, %v1536
        %1538 = vmatprep.mubr.f32.mxu0 %v1442
        %1539 = vmatmul.mubr.f32.gmra.mrb[0].mxu0 %v1229
        %v1540 = vpop.f32.mrb[0].mxu0
        %v1541 = vadd.f32 %v1410, %v1540
        %v1542 = vpop.f32.mrb[0].mxu0
        %v1543 = vadd.f32 %v1410, %v1542
        %1544 = vmatprep.mubr.f32.mxu0 %v1445
        %1545 = vmatmul.mubr.f32.gmra.mrb[0].mxu0 %v1231
        %v1546 = vpop.f32.mrb[0].mxu0
        %v1547 = vadd.f32 %v1415, %v1546
        %v1548 = vpop.f32.mrb[0].mxu0
        %v1549 = vadd.f32 %v1415, %v1548
        %1550 = vmatprep.mubr.f32.mxu0 %v1448
        %1551 = vmatmul.mubr.f32.gmra.mrb[0].mxu0 %v1233
        %v1552 = vpop.f32.mrb[0].mxu0
        %v1553 = vadd.f32 %v1420, %v1552
        %v1554 = vpop.f32.mrb[0].mxu0
        %v1555 = vadd.f32 %v1420, %v1554
        %1556 = vmatprep.mubr.f32.mxu0 %v1451
        %1557 = vmatmul.mubr.f32.gmra.mrb[0].mxu0 %v1235
        %v1558 = vpop.f32.mrb[0].mxu0
        %v1559 = vadd.f32 %v1425, %v1558
        %v1560 = vpop.f32.mrb[0].mxu0
        %v1561 = vadd.f32 %v1425, %v1560
        %1562 = vmatprep.mubr.f32.mxu0 %v1454
        %1563 = vmatmul.mubr.f32.gmra.mrb[0].mxu0 %v1237
        %v1564 = vpop.f32.mrb[0].mxu0
        %v1565 = vadd.f32 %v1430, %v1564
        %v1566 = vpop.f32.mrb[0].mxu0
        %v1567 = vadd.f32 %v1430, %v1566
        %1568 = vdwg.mxu0
        %v1569 = vmax.f32 %v1523, 0.0
        %v1570 = vmax.f32 %v1525, 0.0
        %v1571 = vmax.f32 %v1529, 0.0
        %v1572 = vmax.f32 %v1531, 0.0
        %v1573 = vmax.f32 %v1535, 0.0
        %v1574 = vmax.f32 %v1537, 0.0
        %v1575 = vmax.f32 %v1541, 0.0
        %v1576 = vmax.f32 %v1543, 0.0
        %v1577 = vmax.f32 %v1547, 0.0
        %v1578 = vmax.f32 %v1549, 0.0
        %v1579 = vmax.f32 %v1553, 0.0
        %v1580 = vmax.f32 %v1555, 0.0
        %v1581 = vmax.f32 %v1559, 0.0
        %v1582 = vmax.f32 %v1561, 0.0
        %v1583 = vmax.f32 %v1565, 0.0
        %v1584 = vmax.f32 %v1567, 0.0
        %1601 = vrot.lane.b32.xlu0 %v1569, 1
        %v1602 = vpop.permute.xlu0 %1601
        %1603 = vrot.lane.b32.xlu0 %v1570, 1
        %v1604 = vpop.permute.xlu0 %1603
        %1605 = vrot.lane.b32.xlu0 %v1571, 1
        %v1606 = vpop.permute.xlu0 %1605
        %1607 = vrot.lane.b32.xlu0 %v1572, 1
        %v1608 = vpop.permute.xlu0 %1607
        %1609 = vrot.lane.b32.xlu0 %v1573, 1
        %v1610 = vpop.permute.xlu0 %1609
        %1611 = vrot.lane.b32.xlu0 %v1574, 1
        %v1612 = vpop.permute.xlu0 %1611
        %1613 = vrot.lane.b32.xlu0 %v1575, 1
        %v1614 = vpop.permute.xlu0 %1613
        %1615 = vrot.lane.b32.xlu0 %v1576, 1
        %v1616 = vpop.permute.xlu0 %1615
        %1617 = vrot.lane.b32.xlu0 %v1577, 1
        %v1618 = vpop.permute.xlu0 %1617
        %1619 = vrot.lane.b32.xlu0 %v1578, 1
        %v1620 = vpop.permute.xlu0 %1619
        %1621 = vrot.lane.b32.xlu0 %v1579, 1
        %v1622 = vpop.permute.xlu0 %1621
        %1623 = vrot.lane.b32.xlu0 %v1580, 1
        %v1624 = vpop.permute.xlu0 %1623
        %1625 = vrot.lane.b32.xlu0 %v1581, 1
        %v1626 = vpop.permute.xlu0 %1625
        %1627 = vrot.lane.b32.xlu0 %v1582, 1
        %v1628 = vpop.permute.xlu0 %1627
        %1629 = vrot.lane.b32.xlu0 %v1583, 1
        %v1630 = vpop.permute.xlu0 %1629
        %1631 = vrot.lane.b32.xlu0 %v1584, 1
        %v1632 = vpop.permute.xlu0 %1631
        %v1633 = vsel %vm479, %v1602, %v1604
        %v1634 = vsel %vm479, %v1606, %v1608
        %v1635 = vsel %vm479, %v1610, %v1612
        %v1636 = vsel %vm479, %v1614, %v1616
        %v1637 = vsel %vm479, %v1618, %v1620
        %v1638 = vsel %vm479, %v1622, %v1624
        %v1639 = vsel %vm479, %v1626, %v1628
        %v1640 = vsel %vm479, %v1630, %v1632
        %v1657 = vsel %vm479, 0.0, %v1602
        %v1658 = vsel %vm479, 0.0, %v1606
        %v1659 = vsel %vm479, 0.0, %v1610
        %v1660 = vsel %vm479, 0.0, %v1614
        %v1661 = vsel %vm479, 0.0, %v1618
        %v1662 = vsel %vm479, 0.0, %v1622
        %v1663 = vsel %vm479, 0.0, %v1626
        %v1664 = vsel %vm479, 0.0, %v1630
        %1665 = vrot.lane.b32.xlu0 %v1569, 127
        %v1666 = vpop.permute.xlu0 %1665
        %1667 = vrot.lane.b32.xlu0 %v1570, 127
        %v1668 = vpop.permute.xlu0 %1667
        %1669 = vrot.lane.b32.xlu0 %v1571, 127
        %v1670 = vpop.permute.xlu0 %1669
        %1671 = vrot.lane.b32.xlu0 %v1572, 127
        %v1672 = vpop.permute.xlu0 %1671
        %1673 = vrot.lane.b32.xlu0 %v1573, 127
        %v1674 = vpop.permute.xlu0 %1673
        %1675 = vrot.lane.b32.xlu0 %v1574, 127
        %v1676 = vpop.permute.xlu0 %1675
        %1677 = vrot.lane.b32.xlu0 %v1575, 127
        %v1678 = vpop.permute.xlu0 %1677
        %1679 = vrot.lane.b32.xlu0 %v1576, 127
        %v1680 = vpop.permute.xlu0 %1679
        %1681 = vrot.lane.b32.xlu0 %v1577, 127
        %v1682 = vpop.permute.xlu0 %1681
        %1683 = vrot.lane.b32.xlu0 %v1578, 127
        %v1684 = vpop.permute.xlu0 %1683
        %1685 = vrot.lane.b32.xlu0 %v1579, 127
        %v1686 = vpop.permute.xlu0 %1685
        %1687 = vrot.lane.b32.xlu0 %v1580, 127
        %v1688 = vpop.permute.xlu0 %1687
        %1689 = vrot.lane.b32.xlu0 %v1581, 127
        %v1690 = vpop.permute.xlu0 %1689
        %1691 = vrot.lane.b32.xlu0 %v1582, 127
        %v1692 = vpop.permute.xlu0 %1691
        %1693 = vrot.lane.b32.xlu0 %v1583, 127
        %v1694 = vpop.permute.xlu0 %1693
        %1695 = vrot.lane.b32.xlu0 %v1584, 127
        %v1696 = vpop.permute.xlu0 %1695
        %v1697 = vsel %vm1359, %v1666, %v1668
        %v1698 = vsel %vm1359, %v1670, %v1672
        %v1699 = vsel %vm1359, %v1674, %v1676
        %v1700 = vsel %vm1359, %v1678, %v1680
        %v1701 = vsel %vm1359, %v1682, %v1684
        %v1702 = vsel %vm1359, %v1686, %v1688
        %v1703 = vsel %vm1359, %v1690, %v1692
        %v1704 = vsel %vm1359, %v1694, %v1696
        %v1721 = vsel %vm1359, %v1668, 0.0
        %v1722 = vsel %vm1359, %v1672, 0.0
        %v1723 = vsel %vm1359, %v1676, 0.0
        %v1724 = vsel %vm1359, %v1680, 0.0
        %v1725 = vsel %vm1359, %v1684, 0.0
        %v1726 = vsel %vm1359, %v1688, 0.0
        %v1727 = vsel %vm1359, %v1692, 0.0
        %v1728 = vsel %vm1359, %v1696, 0.0
        %v1729 = vld [vmem:[%s9] sm:$0xff]
        %v1730 = vld [vmem:[%s9 + $0x8] sm:$0xff]
        %v1731 = vld [vmem:[%s9 + $0x10] sm:$0xf]
        %v1732 = vld [vmem:[%s12] sm:$0xff]
        %v1733 = vld [vmem:[%s12 + $0x8] sm:$0xff]
        %v1734 = vld [vmem:[%s12 + $0x10] sm:$0xf]
        %1736 = vset.pattern.permute.xlu0 0
        %1737 = vperm.xlu0 %1736, %v1732
        %v1738 = vpop.permute.xlu0 %1737
        %1741 = vset.pattern.permute.xlu0 0
        %1742 = vperm.xlu0 %1741, %v1733
        %v1743 = vpop.permute.xlu0 %1742
        %1746 = vset.pattern.permute.xlu0 0
        %1747 = vperm.xlu0 %1746, %v1734
        %v1748 = vpop.permute.xlu0 %1747
        %v1751 = vsel %vm939, %v1729, 0
        %v1754 = vsel %vm939, %v1730, 0
        %v1757 = vsel %vm939, %v1731, 0
        %1759 = vmatprep.subr.mxu0 %v1570
        %1760 = vmatpush1.msra.mxu0 %v1569
        %1761 = vmatprep.subr.mxu0 %v1572
        %1762 = vmatpush1.msra.mxu0 %v1571
        %1763 = vmatprep.subr.mxu0 %v1574
        %1764 = vmatpush1.msra.mxu0 %v1573
        %1765 = vmatprep.subr.mxu0 %v1576
        %1766 = vmatpush1.msra.mxu0 %v1575
        %1767 = vmatprep.subr.mxu0 %v1578
        %1768 = vmatpush1.msra.mxu0 %v1577
        %1769 = vmatprep.subr.mxu0 %v1580
        %1770 = vmatpush1.msra.mxu0 %v1579
        %1771 = vmatprep.subr.mxu0 %v1582
        %1772 = vmatpush1.msra.mxu0 %v1581
        %1773 = vmatprep.subr.mxu0 %v1584
        %1774 = vmatpush1.msra.mxu0 %v1583
        %1775 = vmatprep.subr.mxu0 0.0
        %1776 = vmatpush1.msra.mxu0 0.0
        %1777 = vmatprep.subr.mxu0 0.0
        %1778 = vmatpush1.msra.mxu0 0.0
        %1779 = vmatprep.subr.mxu0 0.0
        %1780 = vmatpush1.msra.mxu0 0.0
        %1781 = vmatprep.subr.mxu0 0.0
        %1782 = vmatpush1.msra.mxu0 0.0
        %1783 = vmatprep.subr.mxu0 0.0
        %1784 = vmatpush1.msra.mxu0 0.0
        %1785 = vmatprep.subr.mxu0 0.0
        %1786 = vmatpush1.msra.mxu0 0.0
        %1787 = vmatprep.subr.mxu0 0.0
        %1788 = vmatpush1.msra.mxu0 0.0
        %1789 = vmatprep.subr.mxu0 0.0
        %1790 = vmatpush1.msra.mxu0 0.0
        %1791 = vmatprep.subr.mxu0 0.0
        %1792 = vmatpush1.msra.mxu0 0.0
        %1793 = vmatprep.subr.mxu0 0.0
        %1794 = vmatpush1.msra.mxu0 0.0
        %1795 = vmatprep.subr.mxu0 0.0
        %1796 = vmatpush1.msra.mxu0 0.0
        %1797 = vmatprep.subr.mxu0 0.0
        %1798 = vmatpush1.msra.mxu0 0.0
        %1799 = vmatprep.subr.mxu0 0.0
        %1800 = vmatpush1.msra.mxu0 0.0
        %1801 = vmatprep.subr.mxu0 0.0
        %1802 = vmatpush1.msra.mxu0 0.0
        %1803 = vmatprep.subr.mxu0 0.0
        %1804 = vmatpush1.msra.mxu0 0.0
        %1805 = vmatprep.subr.mxu0 0.0
        %1806 = vmatpush1.msra.mxu0 0.0
        %1807 = vmatprep.subr.mxu0 0.0
        %1808 = vmatpush1.msra.mxu0 0.0
        %1809 = vmatprep.subr.mxu0 0.0
        %1810 = vmatpush1.msra.mxu0 0.0
        %1811 = vmatprep.subr.mxu0 0.0
        %1812 = vmatpush1.msra.mxu0 0.0
        %1813 = vmatprep.subr.mxu0 0.0
        %1814 = vmatpush1.msra.mxu0 0.0
        %1815 = vmatprep.subr.mxu0 0.0
        %1816 = vmatpush1.msra.mxu0 0.0
        %1817 = vmatprep.subr.mxu0 0.0
        %1818 = vmatpush1.msra.mxu0 0.0
        %1819 = vmatprep.subr.mxu0 0.0
        %1820 = vmatpush1.msra.mxu0 0.0
        %1821 = vmatprep.subr.mxu0 0.0
        %1822 = vmatpush1.msra.mxu0 0.0
        %1823 = vmatprep.mubr.f32.mxu0 0.0
        %1824 = vmatmul.mubr.f32.gmra.mrb[0].mxu0 %v1751
        %v1825 = vpop.f32.mrb[0].mxu0
        %v1826 = vadd.f32 %v1738, %v1825
        %v1827 = vpop.f32.mrb[0].mxu0
        %v1828 = vadd.f32 %v1738, %v1827
        %1829 = vmatprep.mubr.f32.mxu0 0.0
        %1830 = vmatmul.mubr.f32.gmra.mrb[0].mxu0 %v1754
        %v1831 = vpop.f32.mrb[0].mxu0
        %v1832 = vadd.f32 %v1743, %v1831
        %v1833 = vpop.f32.mrb[0].mxu0
        %v1834 = vadd.f32 %v1743, %v1833
        %1835 = vmatprep.mubr.f32.mxu0 0.0
        %1836 = vmatmul.mubr.f32.gmra.mrb[0].mxu0 %v1757
        %v1837 = vpop.f32.mrb[0].mxu0
        %v1838 = vadd.f32 %v1748, %v1837
        %v1839 = vpop.f32.mrb[0].mxu0
        %v1840 = vadd.f32 %v1748, %v1839
        %1841 = vdwg.mxu0
        %v1842 = vld [vmem:[%s10] sm:$0xff]
        %v1843 = vld [vmem:[%s10 + $0x8] sm:$0xff]
        %v1844 = vld [vmem:[%s10 + $0x10] sm:$0xf]
        %v1845 = vsub.f32 %v1657, %v1569
        %v1846 = vsub.f32 %v1633, %v1570
        %v1847 = vsub.f32 %v1658, %v1571
        %v1848 = vsub.f32 %v1634, %v1572
        %v1849 = vsub.f32 %v1659, %v1573
        %v1850 = vsub.f32 %v1635, %v1574
        %v1851 = vsub.f32 %v1660, %v1575
        %v1852 = vsub.f32 %v1636, %v1576
        %v1853 = vsub.f32 %v1661, %v1577
        %v1854 = vsub.f32 %v1637, %v1578
        %v1855 = vsub.f32 %v1662, %v1579
        %v1856 = vsub.f32 %v1638, %v1580
        %v1857 = vsub.f32 %v1663, %v1581
        %v1858 = vsub.f32 %v1639, %v1582
        %v1859 = vsub.f32 %v1664, %v1583
        %v1860 = vsub.f32 %v1640, %v1584
        %v1862 = vsel %vm939, %v1842, 0
        %v1865 = vsel %vm939, %v1843, 0
        %v1868 = vsel %vm939, %v1844, 0
        %1870 = vmatprep.subr.mxu0 %v1846
        %1871 = vmatpush1.msra.mxu0 %v1845
        %1872 = vmatprep.subr.mxu0 %v1848
        %1873 = vmatpush1.msra.mxu0 %v1847
        %1874 = vmatprep.subr.mxu0 %v1850
        %1875 = vmatpush1.msra.mxu0 %v1849
        %1876 = vmatprep.subr.mxu0 %v1852
        %1877 = vmatpush1.msra.mxu0 %v1851
        %1878 = vmatprep.subr.mxu0 %v1854
        %1879 = vmatpush1.msra.mxu0 %v1853
        %1880 = vmatprep.subr.mxu0 %v1856
        %1881 = vmatpush1.msra.mxu0 %v1855
        %1882 = vmatprep.subr.mxu0 %v1858
        %1883 = vmatpush1.msra.mxu0 %v1857
        %1884 = vmatprep.subr.mxu0 %v1860
        %1885 = vmatpush1.msra.mxu0 %v1859
        %1886 = vmatprep.subr.mxu0 0.0
        %1887 = vmatpush1.msra.mxu0 0.0
        %1888 = vmatprep.subr.mxu0 0.0
        %1889 = vmatpush1.msra.mxu0 0.0
        %1890 = vmatprep.subr.mxu0 0.0
        %1891 = vmatpush1.msra.mxu0 0.0
        %1892 = vmatprep.subr.mxu0 0.0
        %1893 = vmatpush1.msra.mxu0 0.0
        %1894 = vmatprep.subr.mxu0 0.0
        %1895 = vmatpush1.msra.mxu0 0.0
        %1896 = vmatprep.subr.mxu0 0.0
        %1897 = vmatpush1.msra.mxu0 0.0
        %1898 = vmatprep.subr.mxu0 0.0
        %1899 = vmatpush1.msra.mxu0 0.0
        %1900 = vmatprep.subr.mxu0 0.0
        %1901 = vmatpush1.msra.mxu0 0.0
        %1902 = vmatprep.subr.mxu0 0.0
        %1903 = vmatpush1.msra.mxu0 0.0
        %1904 = vmatprep.subr.mxu0 0.0
        %1905 = vmatpush1.msra.mxu0 0.0
        %1906 = vmatprep.subr.mxu0 0.0
        %1907 = vmatpush1.msra.mxu0 0.0
        %1908 = vmatprep.subr.mxu0 0.0
        %1909 = vmatpush1.msra.mxu0 0.0
        %1910 = vmatprep.subr.mxu0 0.0
        %1911 = vmatpush1.msra.mxu0 0.0
        %1912 = vmatprep.subr.mxu0 0.0
        %1913 = vmatpush1.msra.mxu0 0.0
        %1914 = vmatprep.subr.mxu0 0.0
        %1915 = vmatpush1.msra.mxu0 0.0
        %1916 = vmatprep.subr.mxu0 0.0
        %1917 = vmatpush1.msra.mxu0 0.0
        %1918 = vmatprep.subr.mxu0 0.0
        %1919 = vmatpush1.msra.mxu0 0.0
        %1920 = vmatprep.subr.mxu0 0.0
        %1921 = vmatpush1.msra.mxu0 0.0
        %1922 = vmatprep.subr.mxu0 0.0
        %1923 = vmatpush1.msra.mxu0 0.0
        %1924 = vmatprep.subr.mxu0 0.0
        %1925 = vmatpush1.msra.mxu0 0.0
        %1926 = vmatprep.subr.mxu0 0.0
        %1927 = vmatpush1.msra.mxu0 0.0
        %1928 = vmatprep.subr.mxu0 0.0
        %1929 = vmatpush1.msra.mxu0 0.0
        %1930 = vmatprep.subr.mxu0 0.0
        %1931 = vmatpush1.msra.mxu0 0.0
        %1932 = vmatprep.subr.mxu0 0.0
        %1933 = vmatpush1.msra.mxu0 0.0
        %1934 = vmatprep.mubr.f32.mxu0 0.0
        %1935 = vmatmul.mubr.f32.gmra.mrb[0].mxu0 %v1862
        %v1936 = vpop.f32.mrb[0].mxu0
        %v1937 = vadd.f32 0.0, %v1936
        %v1938 = vpop.f32.mrb[0].mxu0
        %v1939 = vadd.f32 0.0, %v1938
        %1940 = vmatprep.mubr.f32.mxu0 0.0
        %1941 = vmatmul.mubr.f32.gmra.mrb[0].mxu0 %v1865
        %v1942 = vpop.f32.mrb[0].mxu0
        %v1943 = vadd.f32 0.0, %v1942
        %v1944 = vpop.f32.mrb[0].mxu0
        %v1945 = vadd.f32 0.0, %v1944
        %1946 = vmatprep.mubr.f32.mxu0 0.0
        %1947 = vmatmul.mubr.f32.gmra.mrb[0].mxu0 %v1868
        %v1948 = vpop.f32.mrb[0].mxu0
        %v1949 = vadd.f32 0.0, %v1948
        %v1950 = vpop.f32.mrb[0].mxu0
        %v1951 = vadd.f32 0.0, %v1950
        %1952 = vdwg.mxu0
        %v1953 = vadd.f32 %v1826, %v1937
        %v1954 = vadd.f32 %v1828, %v1939
        %v1955 = vadd.f32 %v1832, %v1943
        %v1956 = vadd.f32 %v1834, %v1945
        %v1957 = vadd.f32 %v1838, %v1949
        %v1958 = vadd.f32 %v1840, %v1951
        %v1959 = vld [vmem:[%s11] sm:$0xff]
        %v1960 = vld [vmem:[%s11 + $0x8] sm:$0xff]
        %v1961 = vld [vmem:[%s11 + $0x10] sm:$0xf]
        %v1962 = vsub.f32 %v1697, %v1569
        %v1963 = vsub.f32 %v1721, %v1570
        %v1964 = vsub.f32 %v1698, %v1571
        %v1965 = vsub.f32 %v1722, %v1572
        %v1966 = vsub.f32 %v1699, %v1573
        %v1967 = vsub.f32 %v1723, %v1574
        %v1968 = vsub.f32 %v1700, %v1575
        %v1969 = vsub.f32 %v1724, %v1576
        %v1970 = vsub.f32 %v1701, %v1577
        %v1971 = vsub.f32 %v1725, %v1578
        %v1972 = vsub.f32 %v1702, %v1579
        %v1973 = vsub.f32 %v1726, %v1580
        %v1974 = vsub.f32 %v1703, %v1581
        %v1975 = vsub.f32 %v1727, %v1582
        %v1976 = vsub.f32 %v1704, %v1583
        %v1977 = vsub.f32 %v1728, %v1584
        %v1979 = vsel %vm939, %v1959, 0
        %v1982 = vsel %vm939, %v1960, 0
        %v1985 = vsel %vm939, %v1961, 0
        %1987 = vmatprep.subr.mxu0 %v1963
        %1988 = vmatpush1.msra.mxu0 %v1962
        %1989 = vmatprep.subr.mxu0 %v1965
        %1990 = vmatpush1.msra.mxu0 %v1964
        %1991 = vmatprep.subr.mxu0 %v1967
        %1992 = vmatpush1.msra.mxu0 %v1966
        %1993 = vmatprep.subr.mxu0 %v1969
        %1994 = vmatpush1.msra.mxu0 %v1968
        %1995 = vmatprep.subr.mxu0 %v1971
        %1996 = vmatpush1.msra.mxu0 %v1970
        %1997 = vmatprep.subr.mxu0 %v1973
        %1998 = vmatpush1.msra.mxu0 %v1972
        %1999 = vmatprep.subr.mxu0 %v1975
        %2000 = vmatpush1.msra.mxu0 %v1974
        %2001 = vmatprep.subr.mxu0 %v1977
        %2002 = vmatpush1.msra.mxu0 %v1976
        %2003 = vmatprep.subr.mxu0 0.0
        %2004 = vmatpush1.msra.mxu0 0.0
        %2005 = vmatprep.subr.mxu0 0.0
        %2006 = vmatpush1.msra.mxu0 0.0
        %2007 = vmatprep.subr.mxu0 0.0
        %2008 = vmatpush1.msra.mxu0 0.0
        %2009 = vmatprep.subr.mxu0 0.0
        %2010 = vmatpush1.msra.mxu0 0.0
        %2011 = vmatprep.subr.mxu0 0.0
        %2012 = vmatpush1.msra.mxu0 0.0
        %2013 = vmatprep.subr.mxu0 0.0
        %2014 = vmatpush1.msra.mxu0 0.0
        %2015 = vmatprep.subr.mxu0 0.0
        %2016 = vmatpush1.msra.mxu0 0.0
        %2017 = vmatprep.subr.mxu0 0.0
        %2018 = vmatpush1.msra.mxu0 0.0
        %2019 = vmatprep.subr.mxu0 0.0
        %2020 = vmatpush1.msra.mxu0 0.0
        %2021 = vmatprep.subr.mxu0 0.0
        %2022 = vmatpush1.msra.mxu0 0.0
        %2023 = vmatprep.subr.mxu0 0.0
        %2024 = vmatpush1.msra.mxu0 0.0
        %2025 = vmatprep.subr.mxu0 0.0
        %2026 = vmatpush1.msra.mxu0 0.0
        %2027 = vmatprep.subr.mxu0 0.0
        %2028 = vmatpush1.msra.mxu0 0.0
        %2029 = vmatprep.subr.mxu0 0.0
        %2030 = vmatpush1.msra.mxu0 0.0
        %2031 = vmatprep.subr.mxu0 0.0
        %2032 = vmatpush1.msra.mxu0 0.0
        %2033 = vmatprep.subr.mxu0 0.0
        %2034 = vmatpush1.msra.mxu0 0.0
        %2035 = vmatprep.subr.mxu0 0.0
        %2036 = vmatpush1.msra.mxu0 0.0
        %2037 = vmatprep.subr.mxu0 0.0
        %2038 = vmatpush1.msra.mxu0 0.0
        %2039 = vmatprep.subr.mxu0 0.0
        %2040 = vmatpush1.msra.mxu0 0.0
        %2041 = vmatprep.subr.mxu0 0.0
        %2042 = vmatpush1.msra.mxu0 0.0
        %2043 = vmatprep.subr.mxu0 0.0
        %2044 = vmatpush1.msra.mxu0 0.0
        %2045 = vmatprep.subr.mxu0 0.0
        %2046 = vmatpush1.msra.mxu0 0.0
        %2047 = vmatprep.subr.mxu0 0.0
        %2048 = vmatpush1.msra.mxu0 0.0
        %2049 = vmatprep.subr.mxu0 0.0
        %2050 = vmatpush1.msra.mxu0 0.0
        %2051 = vmatprep.mubr.f32.mxu0 0.0
        %2052 = vmatmul.mubr.f32.gmra.mrb[0].mxu0 %v1979
        %v2053 = vpop.f32.mrb[0].mxu0
        %v2054 = vadd.f32 0.0, %v2053
        %v2055 = vpop.f32.mrb[0].mxu0
        %v2056 = vadd.f32 0.0, %v2055
        %2057 = vmatprep.mubr.f32.mxu0 0.0
        %2058 = vmatmul.mubr.f32.gmra.mrb[0].mxu0 %v1982
        %v2059 = vpop.f32.mrb[0].mxu0
        %v2060 = vadd.f32 0.0, %v2059
        %v2061 = vpop.f32.mrb[0].mxu0
        %v2062 = vadd.f32 0.0, %v2061
        %2063 = vmatprep.mubr.f32.mxu0 0.0
        %2064 = vmatmul.mubr.f32.gmra.mrb[0].mxu0 %v1985
        %v2065 = vpop.f32.mrb[0].mxu0
        %v2066 = vadd.f32 0.0, %v2065
        %v2067 = vpop.f32.mrb[0].mxu0
        %v2068 = vadd.f32 0.0, %v2067
        %2069 = vdwg.mxu0
        %v2070 = vadd.f32 %v1826, %v2054
        %v2071 = vadd.f32 %v1828, %v2056
        %v2072 = vadd.f32 %v1832, %v2060
        %v2073 = vadd.f32 %v1834, %v2062
        %v2074 = vadd.f32 %v1838, %v2066
        %v2075 = vadd.f32 %v1840, %v2068
        %2076 = vst [vmem:[%s457] sm:$0xff] %v1953
        %2077 = vst [vmem:[%s457 + $0x8] sm:$0xff] %v1954
        %2078 = vst [vmem:[%s457 + $0x10] sm:$0xff] %v1955
        %2079 = vst [vmem:[%s457 + $0x18] sm:$0xff] %v1956
        %2080 = vst [vmem:[%s457 + $0x20] sm:$0xf] %v1957
        %2081 = vst [vmem:[%s457 + $0x28] sm:$0xf] %v1958
        %s2082 = scalar_lea.vmem %s457, 48
        %2083 = vst [vmem:[%s2082] sm:$0xff] %v1826
        %2084 = vst [vmem:[%s2082 + $0x8] sm:$0xff] %v1828
        %2085 = vst [vmem:[%s2082 + $0x10] sm:$0xff] %v1832
        %2086 = vst [vmem:[%s2082 + $0x18] sm:$0xff] %v1834
        %2087 = vst [vmem:[%s2082 + $0x20] sm:$0xf] %v1838
        %2088 = vst [vmem:[%s2082 + $0x28] sm:$0xf] %v1840
        %s2089 = scalar_lea.vmem %s457, 96
        %2090 = vst [vmem:[%s2089] sm:$0xff] %v1826
        %2091 = vst [vmem:[%s2089 + $0x8] sm:$0xff] %v1828
        %2092 = vst [vmem:[%s2089 + $0x10] sm:$0xff] %v1832
        %2093 = vst [vmem:[%s2089 + $0x18] sm:$0xff] %v1834
        %2094 = vst [vmem:[%s2089 + $0x20] sm:$0xf] %v1838
        %2095 = vst [vmem:[%s2089 + $0x28] sm:$0xf] %v1840
        %s2096 = scalar_lea.vmem %s457, 144
        %2097 = vst [vmem:[%s2096] sm:$0xff] %v1826
        %2098 = vst [vmem:[%s2096 + $0x8] sm:$0xff] %v1828
        %2099 = vst [vmem:[%s2096 + $0x10] sm:$0xff] %v1832
        %2100 = vst [vmem:[%s2096 + $0x18] sm:$0xff] %v1834
        %2101 = vst [vmem:[%s2096 + $0x20] sm:$0xf] %v1838
        %2102 = vst [vmem:[%s2096 + $0x28] sm:$0xf] %v1840
        %s2103 = scalar_lea.vmem %s457, 192
        %2104 = vst [vmem:[%s2103] sm:$0xff] %v1826
        %2105 = vst [vmem:[%s2103 + $0x8] sm:$0xff] %v1828
        %2106 = vst [vmem:[%s2103 + $0x10] sm:$0xff] %v1832
        %2107 = vst [vmem:[%s2103 + $0x18] sm:$0xff] %v1834
        %2108 = vst [vmem:[%s2103 + $0x20] sm:$0xf] %v1838
        %2109 = vst [vmem:[%s2103 + $0x28] sm:$0xf] %v1840
        %s2110 = scalar_lea.vmem %s457, 240
        %2111 = vst [vmem:[%s2110] sm:$0xff] %v1826
        %2112 = vst [vmem:[%s2110 + $0x8] sm:$0xff] %v1828
        %2113 = vst [vmem:[%s2110 + $0x10] sm:$0xff] %v1832
        %2114 = vst [vmem:[%s2110 + $0x18] sm:$0xff] %v1834
        %2115 = vst [vmem:[%s2110 + $0x20] sm:$0xf] %v1838
        %2116 = vst [vmem:[%s2110 + $0x28] sm:$0xf] %v1840
        %s2117 = scalar_lea.vmem %s457, 288
        %2118 = vst [vmem:[%s2117] sm:$0xff] %v1826
        %2119 = vst [vmem:[%s2117 + $0x8] sm:$0xff] %v1828
        %2120 = vst [vmem:[%s2117 + $0x10] sm:$0xff] %v1832
        %2121 = vst [vmem:[%s2117 + $0x18] sm:$0xff] %v1834
        %2122 = vst [vmem:[%s2117 + $0x20] sm:$0xf] %v1838
        %2123 = vst [vmem:[%s2117 + $0x28] sm:$0xf] %v1840
        %s2124 = scalar_lea.vmem %s457, 336
        %2125 = vst [vmem:[%s2124] sm:$0xff] %v2070
        %2126 = vst [vmem:[%s2124 + $0x8] sm:$0xff] %v2071
        %2127 = vst [vmem:[%s2124 + $0x10] sm:$0xff] %v2072
        %2128 = vst [vmem:[%s2124 + $0x18] sm:$0xff] %v2073
        %2129 = vst [vmem:[%s2124 + $0x20] sm:$0xf] %v2074
        %2130 = vst [vmem:[%s2124 + $0x28] sm:$0xf] %v2075
        %p2131 = scmp.lt.s32.totalorder %s27, 1
        %s2132 = scalar_select %p2131, %s27, 1
        %s2133 = smul.addr %s2132, 48
        %s2134 = smul.addr %s2133, 8
        %s2135 = scalar_lea.vmem %s13, %s2134
        // Predicated region
        $region77: #{decoder_forward.1} parent=71 // pred_check
          %p2136 = pneg %p323
        $region78: #{decoder_forward.1} parent=71 // pred_check_branch
          %2138 = sbr.rel (%p2136) target = $region80
        $region79: #{decoder_forward.1} parent=71 // pred_region
          _
        $region80: #{decoder_forward.1} parent=71 // pred_fallthru
          _
      $region72: #{decoder_forward.1} parent=5 // pred_fallthru
        _
      %p2139 = scmp.le.s32.totalorder 2, %s22
      // Predicated region
      $region81: #{decoder_forward.1} parent=5 // pred_check
        %p2140 = pneg %p2139
      $region82: #{decoder_forward.1} parent=5 // pred_check_branch
        %2142 = sbr.rel (%p2140) target = $region84
      $region83: #{decoder_forward.1} parent=5 // pred_region
        %s2143 = ssub.s32 %s22, 2
        // Predicated region
        $region85: #{decoder_forward.1} parent=83 // pred_check
          %p2144 = pneg %p329
        $region86: #{decoder_forward.1} parent=83 // pred_check_branch
          %2146 = sbr.rel (%p2144) target = $region88
        $region87: #{decoder_forward.1} parent=83 // pred_region
          %p2147 = scmp.lt.s32.totalorder %s28, 1
          %s2148 = scalar_select %p2147, %s28, 1
          %s2149 = smul.addr %s2148, 48
          %s2150 = smul.addr %s2149, 8
          %s2151 = scalar_lea.vmem %s13, %s2150
        $region88: #{decoder_forward.1} parent=83 // pred_fallthru
          _
      $region84: #{decoder_forward.1} parent=5 // pred_fallthru
        _
    $region6: #{decoder_forward.1} parent=1 // loop_footer
      %s26 = sadd.s32 1, %s22
    $region7: #{decoder_forward.1} parent=1 // loop_footer_branch
      %21 = sbr.rel target = $region3
    $region8: #{decoder_forward.1} parent=1 // loop_exit
      _
    %2152 = vsyncpa [#allocation3], 1
    %s2153 = scalar_lea.sflag [#allocation3], 1
    %2154 = vsyncpa %s2153, 1

</llo_original>
